<compile_context>
chip_gen: v6e
topology: v6e:2x2x1
jax: 0.10.0
libtpu: 0.0.40
codegen_flags: <defaults>
</compile_context>

<pallas_src>
import jax
import jax.numpy as jnp
import numpy as np
from jax.experimental import pallas as pl
from jax.experimental.pallas import tpu as pltpu


# ----------------------------------------------------------------------------
# Fused kernel: per-label g_l features + classifier head + log_softmax.
# ----------------------------------------------------------------------------
def _fused_kernel(sent1_ref, sent2_ref, att1_ref, att2_ref,
                  gw1a_ref, gw1b_ref, gb1_ref, gw2_ref, gb2_ref,
                  hw1_ref, hb1_ref, hw2_ref, hb2_ref, hw3_ref, hb3_ref,
                  out_ref):
    B, L1, H = sent1_ref.shape
    L2 = sent2_ref.shape[1]
    num_att_labels = gw1a_ref.shape[0]

    sent1 = sent1_ref[...]                       # [B, L1, H]
    sent2 = sent2_ref[...]                       # [B, L2, H]
    att1 = att1_ref[...]                         # [B, L1, num_att_labels*L2]
    att2 = att2_ref[...]                         # [B, L2, num_att_labels*L1]
    s1_flat = sent1.reshape(B * L1, H)           # [B*L1, H]
    s2_flat = sent2.reshape(B * L2, H)           # [B*L2, H]

    # Accumulator for the head's first linear layer (phi @ h_w1^T), built up
    # per (label, sentence) piece so phi is never concatenated along lanes.
    acc = jnp.zeros((B, H), jnp.float32)

    for l in range(num_att_labels):              # small, static unroll
        a1 = att1[:, :, l * L2:(l + 1) * L2]     # [B, L1, L2]
        a2 = att2[:, :, l * L1:(l + 1) * L1]     # [B, L2, L1]

        # Batched attention contraction (single dot_general per direction).
        attended2 = jnp.einsum('bij,bjh->bih', a1, sent2,
                               preferred_element_type=jnp.float32)   # [B, L1, H]
        attended1 = jnp.einsum('bij,bjh->bih', a2, sent1,
                               preferred_element_type=jnp.float32)   # [B, L2, H]

        w1a = gw1a_ref[l]                        # [H, H]  (acts on sent)
        w1b = gw1b_ref[l]                        # [H, H]  (acts on attended)
        b1 = gb1_ref[l]                          # [1, H]
        w2 = gw2_ref[l]                          # [H, H]
        b2 = gb2_ref[l]                          # [1, H]

        def g_sum(x_flat, att_flat, L):
            # relu(relu([x|att] W1^T + b1) W2^T + b2), summed over sequence.
            h1 = jnp.maximum(
                jnp.dot(x_flat, w1a, preferred_element_type=jnp.float32)
                + jnp.dot(att_flat, w1b, preferred_element_type=jnp.float32)
                + b1, 0.0)                                           # [B*L, H]
            h2 = jnp.maximum(
                jnp.dot(h1, w2, preferred_element_type=jnp.float32) + b2,
                0.0)                                                 # [B*L, H]
            return h2.reshape(B, L, H).sum(axis=1)                   # [B, H]

        phi1 = g_sum(s1_flat, attended2.reshape(B * L1, H), L1)      # [B, H]
        phi2 = g_sum(s2_flat, attended1.reshape(B * L2, H), L2)      # [B, H]

        # Head W1 split: phi ordering is [phi1_l0|phi2_l0|phi1_l1|phi2_l1|...]
        acc += jnp.dot(phi1, hw1_ref[2 * l],
                       preferred_element_type=jnp.float32)
        acc += jnp.dot(phi2, hw1_ref[2 * l + 1],
                       preferred_element_type=jnp.float32)

    # Classifier head tail + stabilized log_softmax.
    h1 = jnp.maximum(acc + hb1_ref[...], 0.0)                        # [B, H]
    h2 = jnp.maximum(
        jnp.dot(h1, hw2_ref[...], preferred_element_type=jnp.float32)
        + hb2_ref[...], 0.0)                                         # [B, H]
    scores = (jnp.dot(h2, hw3_ref[...], preferred_element_type=jnp.float32)
              + hb3_ref[...])                                        # [B, num_labels]
    m = jnp.max(scores, axis=1, keepdims=True)
    lse = m + jnp.log(jnp.sum(jnp.exp(scores - m), axis=1, keepdims=True))
    out_ref[...] = (scores - lse).astype(out_ref.dtype)


# ----------------------------------------------------------------------------
# Wrapper (pure-JAX weight re-layout glue; tiny, one-off per call).
# ----------------------------------------------------------------------------
def labeled_local_n_classifier_forward(sent1, sent2, att1, att2, params):
    B, L1, H = sent1.shape
    num_att_labels = params['g_w1'].shape[0]
    num_labels = params['h_w3'].shape[0]

    # g_l weights: PyTorch [out,in] -> [in,out]; split W1 into sent/attended halves.
    g_w1_t = jnp.transpose(params['g_w1'], (0, 2, 1))        # [L, 2H, H]
    g_w1a = g_w1_t[:, :H, :]                                 # [L, H, H] (sent)
    g_w1b = g_w1_t[:, H:, :]                                 # [L, H, H] (attended)
    g_w2_t = jnp.transpose(params['g_w2'], (0, 2, 1))        # [L, H, H]
    g_b1 = params['g_b1'][:, None, :]                        # [L, 1, H]
    g_b2 = params['g_b2'][:, None, :]                        # [L, 1, H]

    # Head weights: W1 pre-split into per-(label, half) [H, H] blocks so the
    # kernel can accumulate phi pieces without a lane-axis concat.
    h_w1_t = params['h_w1'].T.reshape(2 * num_att_labels, H, H)
    h_w2_t = params['h_w2'].T                                # [H, H]
    h_w3_t = params['h_w3'].T                                # [H, num_labels]
    h_b1 = params['h_b1'][None, :]
    h_b2 = params['h_b2'][None, :]
    h_b3 = params['h_b3'][None, :]

    vmem = pl.BlockSpec(memory_space=pltpu.MemorySpace.VMEM)
    out = pl.pallas_call(
        _fused_kernel,
        out_shape=jax.ShapeDtypeStruct((B, num_labels), jnp.float32),
        in_specs=[vmem] * 15,
        out_specs=vmem,
    )(sent1, sent2, att1, att2,
      g_w1a, g_w1b, g_b1, g_w2_t, g_b2,
      h_w1_t, h_b1, h_w2_t, h_b2, h_w3_t, h_b3)
    return out


# ----------------------------------------------------------------------------
# Deterministic parameter init (shapes from the module's __init__).
# ----------------------------------------------------------------------------
def init_params(key, H, num_att_labels, num_labels):
    cat_size = 2 * H * num_att_labels

    def lin(k, out_f, in_f):
        kw, kb = jax.random.split(k)
        bound = 1.0 / (in_f ** 0.5)
        w = jax.random.uniform(kw, (out_f, in_f), jnp.float32, -bound, bound)
        b = jax.random.uniform(kb, (out_f,), jnp.float32, -bound, bound)
        return w, b

    keys = jax.random.split(key, 2 * num_att_labels + 3)
    gw1, gb1, gw2, gb2 = [], [], [], []
    for l in range(num_att_labels):
        w, b = lin(keys[2 * l], H, 2 * H)
        gw1.append(w); gb1.append(b)
        w, b = lin(keys[2 * l + 1], H, H)
        gw2.append(w); gb2.append(b)
    hw1, hb1 = lin(keys[-3], H, cat_size)
    hw2, hb2 = lin(keys[-2], H, H)
    hw3, hb3 = lin(keys[-1], num_labels, H)
    return {
        'g_w1': jnp.stack(gw1), 'g_b1': jnp.stack(gb1),
        'g_w2': jnp.stack(gw2), 'g_b2': jnp.stack(gb2),
        'h_w1': hw1, 'h_b1': hb1,
        'h_w2': hw2, 'h_b2': hb2,
        'h_w3': hw3, 'h_b3': hb3,
    }


# ----------------------------------------------------------------------------
# Pure-JAX reference (mirrors the PyTorch forward, dropout = identity).
# ----------------------------------------------------------------------------
def reference(sent1, sent2, att1, att2, params):
    B, L1, H = sent1.shape
    L2 = sent2.shape[1]
    num_att_labels = params['g_w1'].shape[0]
    phis = []
    for l in range(num_att_labels):
        a1 = att1[:, :, l * L2:(l + 1) * L2]
        a2 = att2[:, :, l * L1:(l + 1) * L1]
        attended2 = jnp.einsum('bij,bjh->bih', a1, sent2)
        attended1 = jnp.einsum('bij,bjh->bih', a2, sent1)
        inp1 = jnp.concatenate([sent1, attended2], -1)
        inp2 = jnp.concatenate([sent2, attended1], -1)
        w1, b1 = params['g_w1'][l], params['g_b1'][l]
        w2, b2 = params['g_w2'][l], params['g_b2'][l]

        def g(x):
            h1 = jnp.maximum(x @ w1.T + b1, 0.0)
            h2 = jnp.maximum(h1 @ w2.T + b2, 0.0)
            return h2

        phis.append(g(inp1).sum(1))
        phis.append(g(inp2).sum(1))
    phi = jnp.concatenate(phis, axis=1)
    h1 = jnp.maximum(phi @ params['h_w1'].T + params['h_b1'], 0.0)
    h2 = jnp.maximum(h1 @ params['h_w2'].T + params['h_b2'], 0.0)
    scores = h2 @ params['h_w3'].T + params['h_b3']
    return jax.nn.log_softmax(scores, axis=1)


if __name__ == "__main__":
    B, L1, L2, H = 2, 8, 6, 32
    num_att_labels, num_labels = 2, 4

    key = jax.random.PRNGKey(0)
    k = jax.random.split(key, 5)
    sent1 = jax.random.normal(k[0], (B, L1, H), jnp.float32)
    sent2 = jax.random.normal(k[1], (B, L2, H), jnp.float32)
    att1 = jax.nn.softmax(
        jax.random.normal(k[2], (B, L1, num_att_labels * L2), jnp.float32), -1)
    att2 = jax.nn.softmax(
        jax.random.normal(k[3], (B, L2, num_att_labels * L1), jnp.float32), -1)
    params = init_params(k[4], H, num_att_labels, num_labels)

    out = labeled_local_n_classifier_forward(sent1, sent2, att1, att2, params)
    jax.block_until_ready(out)

    ref = reference(sent1, sent2, att1, att2, params)
    assert out.shape == (B, num_labels)
    np.testing.assert_allclose(np.asarray(out), np.asarray(ref),
                               rtol=1e-4, atol=1e-4)
    print("KERNEL_OK")
</pallas_src>

<mosaic_0001>
module attributes {stable_mosaic.version = 11 : i64} {
  func.func @_fused_kernel(%arg0: memref<2x8x32xf32, #tpu.memory_space<vmem>>, %arg1: memref<2x6x32xf32, #tpu.memory_space<vmem>>, %arg2: memref<2x8x12xf32, #tpu.memory_space<vmem>>, %arg3: memref<2x6x16xf32, #tpu.memory_space<vmem>>, %arg4: memref<2x32x32xf32, #tpu.memory_space<vmem>>, %arg5: memref<2x32x32xf32, #tpu.memory_space<vmem>>, %arg6: memref<2x1x32xf32, #tpu.memory_space<vmem>>, %arg7: memref<2x32x32xf32, #tpu.memory_space<vmem>>, %arg8: memref<2x1x32xf32, #tpu.memory_space<vmem>>, %arg9: memref<4x32x32xf32, #tpu.memory_space<vmem>>, %arg10: memref<1x32xf32, #tpu.memory_space<vmem>>, %arg11: memref<32x32xf32, #tpu.memory_space<vmem>>, %arg12: memref<1x32xf32, #tpu.memory_space<vmem>>, %arg13: memref<32x4xf32, #tpu.memory_space<vmem>>, %arg14: memref<1x4xf32, #tpu.memory_space<vmem>>, %arg15: memref<2x4xf32, #tpu.memory_space<vmem>>) attributes {dimension_semantics = [], scalar_prefetch = 0 : i64, scratch_operands = 0 : i64, tpu.core_type = #tpu.core_type<tc>} {
    %c0 = arith.constant 0 : index
    %c0_0 = arith.constant 0 : index
    %c0_1 = arith.constant 0 : index
    %0 = vector.load %arg0[%c0, %c0_0, %c0_1] : memref<2x8x32xf32, #tpu.memory_space<vmem>>, vector<2x8x32xf32>
    %c0_2 = arith.constant 0 : index
    %c0_3 = arith.constant 0 : index
    %c0_4 = arith.constant 0 : index
    %1 = vector.load %arg1[%c0_2, %c0_3, %c0_4] : memref<2x6x32xf32, #tpu.memory_space<vmem>>, vector<2x6x32xf32>
    %c0_5 = arith.constant 0 : index
    %c0_6 = arith.constant 0 : index
    %c0_7 = arith.constant 0 : index
    %2 = vector.load %arg2[%c0_5, %c0_6, %c0_7] : memref<2x8x12xf32, #tpu.memory_space<vmem>>, vector<2x8x12xf32>
    %c0_8 = arith.constant 0 : index
    %c0_9 = arith.constant 0 : index
    %c0_10 = arith.constant 0 : index
    %3 = vector.load %arg3[%c0_8, %c0_9, %c0_10] : memref<2x6x16xf32, #tpu.memory_space<vmem>>, vector<2x6x16xf32>
    %4 = vector.shape_cast %0 : vector<2x8x32xf32> to vector<16x32xf32>
    %5 = vector.shape_cast %1 : vector<2x6x32xf32> to vector<12x32xf32>
    %cst = arith.constant 0.000000e+00 : f32
    %6 = vector.broadcast %cst : f32 to vector<2x32xf32>
    %7 = vector.extract_strided_slice %2 {offsets = [0, 0, 0], sizes = [2, 8, 6], strides = [1, 1, 1]} : vector<2x8x12xf32> to vector<2x8x6xf32>
    %8 = vector.extract_strided_slice %3 {offsets = [0, 0, 0], sizes = [2, 6, 8], strides = [1, 1, 1]} : vector<2x6x16xf32> to vector<2x6x8xf32>
    "tpu.trace_start"() <{level = 10 : i32, message = "bij,bjh->bih"}> : () -> ()
    %cst_11 = arith.constant dense<0.000000e+00> : vector<2x8x32xf32>
    %9 = tpu.matmul %7, %1, %cst_11 {dimension_numbers = #tpu.dot_dimension_numbers<[2], [1], [1], [2], [0, 0, 0, 1, 1, 2], [0], [0]>} : vector<2x8x6xf32>, vector<2x6x32xf32>, vector<2x8x32xf32> -> vector<2x8x32xf32>
    %cst_12 = arith.constant dense<0.000000e+00> : vector<2x6x32xf32>
    %10 = tpu.matmul %8, %0, %cst_12 {dimension_numbers = #tpu.dot_dimension_numbers<[2], [1], [1], [2], [0, 0, 0, 1, 1, 2], [0], [0]>} : vector<2x6x8xf32>, vector<2x8x32xf32>, vector<2x6x32xf32> -> vector<2x6x32xf32>
    "tpu.trace_stop"() : () -> ()
    %c0_13 = arith.constant 0 : index
    %c0_14 = arith.constant 0 : index
    %c0_15 = arith.constant 0 : index
    %11 = vector.load %arg4[%c0_13, %c0_14, %c0_15] : memref<2x32x32xf32, #tpu.memory_space<vmem>>, vector<1x32x32xf32>
    %12 = vector.shape_cast %11 : vector<1x32x32xf32> to vector<32x32xf32>
    %c0_16 = arith.constant 0 : index
    %c0_17 = arith.constant 0 : index
    %c0_18 = arith.constant 0 : index
    %13 = vector.load %arg5[%c0_16, %c0_17, %c0_18] : memref<2x32x32xf32, #tpu.memory_space<vmem>>, vector<1x32x32xf32>
    %14 = vector.shape_cast %13 : vector<1x32x32xf32> to vector<32x32xf32>
    %c0_19 = arith.constant 0 : index
    %c0_20 = arith.constant 0 : index
    %c0_21 = arith.constant 0 : index
    %15 = vector.load %arg6[%c0_19, %c0_20, %c0_21] : memref<2x1x32xf32, #tpu.memory_space<vmem>>, vector<1x1x32xf32>
    %16 = vector.shape_cast %15 : vector<1x1x32xf32> to vector<1x32xf32>
    %c0_22 = arith.constant 0 : index
    %c0_23 = arith.constant 0 : index
    %c0_24 = arith.constant 0 : index
    %17 = vector.load %arg7[%c0_22, %c0_23, %c0_24] : memref<2x32x32xf32, #tpu.memory_space<vmem>>, vector<1x32x32xf32>
    %18 = vector.shape_cast %17 : vector<1x32x32xf32> to vector<32x32xf32>
    %c0_25 = arith.constant 0 : index
    %c0_26 = arith.constant 0 : index
    %c0_27 = arith.constant 0 : index
    %19 = vector.load %arg8[%c0_25, %c0_26, %c0_27] : memref<2x1x32xf32, #tpu.memory_space<vmem>>, vector<1x1x32xf32>
    %20 = vector.shape_cast %19 : vector<1x1x32xf32> to vector<1x32xf32>
    %21 = vector.shape_cast %9 : vector<2x8x32xf32> to vector<16x32xf32>
    %cst_28 = arith.constant dense<0.000000e+00> : vector<16x32xf32>
    %22 = tpu.matmul %4, %12, %cst_28 {dimension_numbers = #tpu.dot_dimension_numbers<[1], [0], [0], [1], [0, 0, 1, 1], [], []>} : vector<16x32xf32>, vector<32x32xf32>, vector<16x32xf32> -> vector<16x32xf32>
    %cst_29 = arith.constant dense<0.000000e+00> : vector<16x32xf32>
    %23 = tpu.matmul %21, %14, %cst_29 {dimension_numbers = #tpu.dot_dimension_numbers<[1], [0], [0], [1], [0, 0, 1, 1], [], []>} : vector<16x32xf32>, vector<32x32xf32>, vector<16x32xf32> -> vector<16x32xf32>
    %24 = arith.addf %22, %23 : vector<16x32xf32>
    %25 = vector.broadcast %16 : vector<1x32xf32> to vector<16x32xf32>
    %26 = arith.addf %24, %25 : vector<16x32xf32>
    %cst_30 = arith.constant 0.000000e+00 : f32
    %27 = vector.broadcast %cst_30 : f32 to vector<16x32xf32>
    %28 = arith.maximumf %26, %27 : vector<16x32xf32>
    %cst_31 = arith.constant dense<0.000000e+00> : vector<16x32xf32>
    %29 = tpu.matmul %28, %18, %cst_31 {dimension_numbers = #tpu.dot_dimension_numbers<[1], [0], [0], [1], [0, 0, 1, 1], [], []>} : vector<16x32xf32>, vector<32x32xf32>, vector<16x32xf32> -> vector<16x32xf32>
    %30 = vector.broadcast %20 : vector<1x32xf32> to vector<16x32xf32>
    %31 = arith.addf %29, %30 : vector<16x32xf32>
    %cst_32 = arith.constant 0.000000e+00 : f32
    %32 = vector.broadcast %cst_32 : f32 to vector<16x32xf32>
    %33 = arith.maximumf %31, %32 : vector<16x32xf32>
    %34 = vector.shape_cast %33 : vector<16x32xf32> to vector<2x8x32xf32>
    %cst_33 = arith.constant dense<0.000000e+00> : vector<2x32xf32>
    %35 = vector.multi_reduction <add>, %34, %cst_33 [1] : vector<2x8x32xf32> to vector<2x32xf32>
    %36 = vector.shape_cast %10 : vector<2x6x32xf32> to vector<12x32xf32>
    %cst_34 = arith.constant dense<0.000000e+00> : vector<12x32xf32>
    %37 = tpu.matmul %5, %12, %cst_34 {dimension_numbers = #tpu.dot_dimension_numbers<[1], [0], [0], [1], [0, 0, 1, 1], [], []>} : vector<12x32xf32>, vector<32x32xf32>, vector<12x32xf32> -> vector<12x32xf32>
    %cst_35 = arith.constant dense<0.000000e+00> : vector<12x32xf32>
    %38 = tpu.matmul %36, %14, %cst_35 {dimension_numbers = #tpu.dot_dimension_numbers<[1], [0], [0], [1], [0, 0, 1, 1], [], []>} : vector<12x32xf32>, vector<32x32xf32>, vector<12x32xf32> -> vector<12x32xf32>
    %39 = arith.addf %37, %38 : vector<12x32xf32>
    %40 = vector.broadcast %16 : vector<1x32xf32> to vector<12x32xf32>
    %41 = arith.addf %39, %40 : vector<12x32xf32>
    %cst_36 = arith.constant 0.000000e+00 : f32
    %42 = vector.broadcast %cst_36 : f32 to vector<12x32xf32>
    %43 = arith.maximumf %41, %42 : vector<12x32xf32>
    %cst_37 = arith.constant dense<0.000000e+00> : vector<12x32xf32>
    %44 = tpu.matmul %43, %18, %cst_37 {dimension_numbers = #tpu.dot_dimension_numbers<[1], [0], [0], [1], [0, 0, 1, 1], [], []>} : vector<12x32xf32>, vector<32x32xf32>, vector<12x32xf32> -> vector<12x32xf32>
    %45 = vector.broadcast %20 : vector<1x32xf32> to vector<12x32xf32>
    %46 = arith.addf %44, %45 : vector<12x32xf32>
    %cst_38 = arith.constant 0.000000e+00 : f32
    %47 = vector.broadcast %cst_38 : f32 to vector<12x32xf32>
    %48 = arith.maximumf %46, %47 : vector<12x32xf32>
    %49 = vector.shape_cast %48 : vector<12x32xf32> to vector<2x6x32xf32>
    %cst_39 = arith.constant dense<0.000000e+00> : vector<2x32xf32>
    %50 = vector.multi_reduction <add>, %49, %cst_39 [1] : vector<2x6x32xf32> to vector<2x32xf32>
    %c0_40 = arith.constant 0 : index
    %c0_41 = arith.constant 0 : index
    %c0_42 = arith.constant 0 : index
    %51 = vector.load %arg9[%c0_40, %c0_41, %c0_42] : memref<4x32x32xf32, #tpu.memory_space<vmem>>, vector<1x32x32xf32>
    %52 = vector.shape_cast %51 : vector<1x32x32xf32> to vector<32x32xf32>
    %cst_43 = arith.constant dense<0.000000e+00> : vector<2x32xf32>
    %53 = tpu.matmul %35, %52, %cst_43 {dimension_numbers = #tpu.dot_dimension_numbers<[1], [0], [0], [1], [0, 0, 1, 1], [], []>} : vector<2x32xf32>, vector<32x32xf32>, vector<2x32xf32> -> vector<2x32xf32>
    %54 = arith.addf %6, %53 : vector<2x32xf32>
    %c1 = arith.constant 1 : index
    %c0_44 = arith.constant 0 : index
    %c0_45 = arith.constant 0 : index
    %55 = vector.load %arg9[%c1, %c0_44, %c0_45] : memref<4x32x32xf32, #tpu.memory_space<vmem>>, vector<1x32x32xf32>
    %56 = vector.shape_cast %55 : vector<1x32x32xf32> to vector<32x32xf32>
    %cst_46 = arith.constant dense<0.000000e+00> : vector<2x32xf32>
    %57 = tpu.matmul %50, %56, %cst_46 {dimension_numbers = #tpu.dot_dimension_numbers<[1], [0], [0], [1], [0, 0, 1, 1], [], []>} : vector<2x32xf32>, vector<32x32xf32>, vector<2x32xf32> -> vector<2x32xf32>
    %58 = arith.addf %54, %57 : vector<2x32xf32>
    %59 = vector.extract_strided_slice %2 {offsets = [0, 0, 6], sizes = [2, 8, 6], strides = [1, 1, 1]} : vector<2x8x12xf32> to vector<2x8x6xf32>
    %60 = vector.extract_strided_slice %3 {offsets = [0, 0, 8], sizes = [2, 6, 8], strides = [1, 1, 1]} : vector<2x6x16xf32> to vector<2x6x8xf32>
    "tpu.trace_start"() <{level = 10 : i32, message = "bij,bjh->bih"}> : () -> ()
    %cst_47 = arith.constant dense<0.000000e+00> : vector<2x8x32xf32>
    %61 = tpu.matmul %59, %1, %cst_47 {dimension_numbers = #tpu.dot_dimension_numbers<[2], [1], [1], [2], [0, 0, 0, 1, 1, 2], [0], [0]>} : vector<2x8x6xf32>, vector<2x6x32xf32>, vector<2x8x32xf32> -> vector<2x8x32xf32>
    %cst_48 = arith.constant dense<0.000000e+00> : vector<2x6x32xf32>
    %62 = tpu.matmul %60, %0, %cst_48 {dimension_numbers = #tpu.dot_dimension_numbers<[2], [1], [1], [2], [0, 0, 0, 1, 1, 2], [0], [0]>} : vector<2x6x8xf32>, vector<2x8x32xf32>, vector<2x6x32xf32> -> vector<2x6x32xf32>
    "tpu.trace_stop"() : () -> ()
    %c1_49 = arith.constant 1 : index
    %c0_50 = arith.constant 0 : index
    %c0_51 = arith.constant 0 : index
    %63 = vector.load %arg4[%c1_49, %c0_50, %c0_51] : memref<2x32x32xf32, #tpu.memory_space<vmem>>, vector<1x32x32xf32>
    %64 = vector.shape_cast %63 : vector<1x32x32xf32> to vector<32x32xf32>
    %c1_52 = arith.constant 1 : index
    %c0_53 = arith.constant 0 : index
    %c0_54 = arith.constant 0 : index
    %65 = vector.load %arg5[%c1_52, %c0_53, %c0_54] : memref<2x32x32xf32, #tpu.memory_space<vmem>>, vector<1x32x32xf32>
    %66 = vector.shape_cast %65 : vector<1x32x32xf32> to vector<32x32xf32>
    %c1_55 = arith.constant 1 : index
    %c0_56 = arith.constant 0 : index
    %c0_57 = arith.constant 0 : index
    %67 = vector.load %arg6[%c1_55, %c0_56, %c0_57] : memref<2x1x32xf32, #tpu.memory_space<vmem>>, vector<1x1x32xf32>
    %68 = vector.shape_cast %67 : vector<1x1x32xf32> to vector<1x32xf32>
    %c1_58 = arith.constant 1 : index
    %c0_59 = arith.constant 0 : index
    %c0_60 = arith.constant 0 : index
    %69 = vector.load %arg7[%c1_58, %c0_59, %c0_60] : memref<2x32x32xf32, #tpu.memory_space<vmem>>, vector<1x32x32xf32>
    %70 = vector.shape_cast %69 : vector<1x32x32xf32> to vector<32x32xf32>
    %c1_61 = arith.constant 1 : index
    %c0_62 = arith.constant 0 : index
    %c0_63 = arith.constant 0 : index
    %71 = vector.load %arg8[%c1_61, %c0_62, %c0_63] : memref<2x1x32xf32, #tpu.memory_space<vmem>>, vector<1x1x32xf32>
    %72 = vector.shape_cast %71 : vector<1x1x32xf32> to vector<1x32xf32>
    %73 = vector.shape_cast %61 : vector<2x8x32xf32> to vector<16x32xf32>
    %cst_64 = arith.constant dense<0.000000e+00> : vector<16x32xf32>
    %74 = tpu.matmul %4, %64, %cst_64 {dimension_numbers = #tpu.dot_dimension_numbers<[1], [0], [0], [1], [0, 0, 1, 1], [], []>} : vector<16x32xf32>, vector<32x32xf32>, vector<16x32xf32> -> vector<16x32xf32>
    %cst_65 = arith.constant dense<0.000000e+00> : vector<16x32xf32>
    %75 = tpu.matmul %73, %66, %cst_65 {dimension_numbers = #tpu.dot_dimension_numbers<[1], [0], [0], [1], [0, 0, 1, 1], [], []>} : vector<16x32xf32>, vector<32x32xf32>, vector<16x32xf32> -> vector<16x32xf32>
    %76 = arith.addf %74, %75 : vector<16x32xf32>
    %77 = vector.broadcast %68 : vector<1x32xf32> to vector<16x32xf32>
    %78 = arith.addf %76, %77 : vector<16x32xf32>
    %cst_66 = arith.constant 0.000000e+00 : f32
    %79 = vector.broadcast %cst_66 : f32 to vector<16x32xf32>
    %80 = arith.maximumf %78, %79 : vector<16x32xf32>
    %cst_67 = arith.constant dense<0.000000e+00> : vector<16x32xf32>
    %81 = tpu.matmul %80, %70, %cst_67 {dimension_numbers = #tpu.dot_dimension_numbers<[1], [0], [0], [1], [0, 0, 1, 1], [], []>} : vector<16x32xf32>, vector<32x32xf32>, vector<16x32xf32> -> vector<16x32xf32>
    %82 = vector.broadcast %72 : vector<1x32xf32> to vector<16x32xf32>
    %83 = arith.addf %81, %82 : vector<16x32xf32>
    %cst_68 = arith.constant 0.000000e+00 : f32
    %84 = vector.broadcast %cst_68 : f32 to vector<16x32xf32>
    %85 = arith.maximumf %83, %84 : vector<16x32xf32>
    %86 = vector.shape_cast %85 : vector<16x32xf32> to vector<2x8x32xf32>
    %cst_69 = arith.constant dense<0.000000e+00> : vector<2x32xf32>
    %87 = vector.multi_reduction <add>, %86, %cst_69 [1] : vector<2x8x32xf32> to vector<2x32xf32>
    %88 = vector.shape_cast %62 : vector<2x6x32xf32> to vector<12x32xf32>
    %cst_70 = arith.constant dense<0.000000e+00> : vector<12x32xf32>
    %89 = tpu.matmul %5, %64, %cst_70 {dimension_numbers = #tpu.dot_dimension_numbers<[1], [0], [0], [1], [0, 0, 1, 1], [], []>} : vector<12x32xf32>, vector<32x32xf32>, vector<12x32xf32> -> vector<12x32xf32>
    %cst_71 = arith.constant dense<0.000000e+00> : vector<12x32xf32>
    %90 = tpu.matmul %88, %66, %cst_71 {dimension_numbers = #tpu.dot_dimension_numbers<[1], [0], [0], [1], [0, 0, 1, 1], [], []>} : vector<12x32xf32>, vector<32x32xf32>, vector<12x32xf32> -> vector<12x32xf32>
    %91 = arith.addf %89, %90 : vector<12x32xf32>
    %92 = vector.broadcast %68 : vector<1x32xf32> to vector<12x32xf32>
    %93 = arith.addf %91, %92 : vector<12x32xf32>
    %cst_72 = arith.constant 0.000000e+00 : f32
    %94 = vector.broadcast %cst_72 : f32 to vector<12x32xf32>
    %95 = arith.maximumf %93, %94 : vector<12x32xf32>
    %cst_73 = arith.constant dense<0.000000e+00> : vector<12x32xf32>
    %96 = tpu.matmul %95, %70, %cst_73 {dimension_numbers = #tpu.dot_dimension_numbers<[1], [0], [0], [1], [0, 0, 1, 1], [], []>} : vector<12x32xf32>, vector<32x32xf32>, vector<12x32xf32> -> vector<12x32xf32>
    %97 = vector.broadcast %72 : vector<1x32xf32> to vector<12x32xf32>
    %98 = arith.addf %96, %97 : vector<12x32xf32>
    %cst_74 = arith.constant 0.000000e+00 : f32
    %99 = vector.broadcast %cst_74 : f32 to vector<12x32xf32>
    %100 = arith.maximumf %98, %99 : vector<12x32xf32>
    %101 = vector.shape_cast %100 : vector<12x32xf32> to vector<2x6x32xf32>
    %cst_75 = arith.constant dense<0.000000e+00> : vector<2x32xf32>
    %102 = vector.multi_reduction <add>, %101, %cst_75 [1] : vector<2x6x32xf32> to vector<2x32xf32>
    %c2 = arith.constant 2 : index
    %c0_76 = arith.constant 0 : index
    %c0_77 = arith.constant 0 : index
    %103 = vector.load %arg9[%c2, %c0_76, %c0_77] : memref<4x32x32xf32, #tpu.memory_space<vmem>>, vector<1x32x32xf32>
    %104 = vector.shape_cast %103 : vector<1x32x32xf32> to vector<32x32xf32>
    %cst_78 = arith.constant dense<0.000000e+00> : vector<2x32xf32>
    %105 = tpu.matmul %87, %104, %cst_78 {dimension_numbers = #tpu.dot_dimension_numbers<[1], [0], [0], [1], [0, 0, 1, 1], [], []>} : vector<2x32xf32>, vector<32x32xf32>, vector<2x32xf32> -> vector<2x32xf32>
    %106 = arith.addf %58, %105 : vector<2x32xf32>
    %c3 = arith.constant 3 : index
    %c0_79 = arith.constant 0 : index
    %c0_80 = arith.constant 0 : index
    %107 = vector.load %arg9[%c3, %c0_79, %c0_80] : memref<4x32x32xf32, #tpu.memory_space<vmem>>, vector<1x32x32xf32>
    %108 = vector.shape_cast %107 : vector<1x32x32xf32> to vector<32x32xf32>
    %cst_81 = arith.constant dense<0.000000e+00> : vector<2x32xf32>
    %109 = tpu.matmul %102, %108, %cst_81 {dimension_numbers = #tpu.dot_dimension_numbers<[1], [0], [0], [1], [0, 0, 1, 1], [], []>} : vector<2x32xf32>, vector<32x32xf32>, vector<2x32xf32> -> vector<2x32xf32>
    %110 = arith.addf %106, %109 : vector<2x32xf32>
    %c0_82 = arith.constant 0 : index
    %c0_83 = arith.constant 0 : index
    %111 = vector.load %arg10[%c0_82, %c0_83] : memref<1x32xf32, #tpu.memory_space<vmem>>, vector<1x32xf32>
    %112 = vector.broadcast %111 : vector<1x32xf32> to vector<2x32xf32>
    %113 = arith.addf %110, %112 : vector<2x32xf32>
    %cst_84 = arith.constant 0.000000e+00 : f32
    %114 = vector.broadcast %cst_84 : f32 to vector<2x32xf32>
    %115 = arith.maximumf %113, %114 : vector<2x32xf32>
    %c0_85 = arith.constant 0 : index
    %c0_86 = arith.constant 0 : index
    %116 = vector.load %arg11[%c0_85, %c0_86] : memref<32x32xf32, #tpu.memory_space<vmem>>, vector<32x32xf32>
    %cst_87 = arith.constant dense<0.000000e+00> : vector<2x32xf32>
    %117 = tpu.matmul %115, %116, %cst_87 {dimension_numbers = #tpu.dot_dimension_numbers<[1], [0], [0], [1], [0, 0, 1, 1], [], []>} : vector<2x32xf32>, vector<32x32xf32>, vector<2x32xf32> -> vector<2x32xf32>
    %c0_88 = arith.constant 0 : index
    %c0_89 = arith.constant 0 : index
    %118 = vector.load %arg12[%c0_88, %c0_89] : memref<1x32xf32, #tpu.memory_space<vmem>>, vector<1x32xf32>
    %119 = vector.broadcast %118 : vector<1x32xf32> to vector<2x32xf32>
    %120 = arith.addf %117, %119 : vector<2x32xf32>
    %cst_90 = arith.constant 0.000000e+00 : f32
    %121 = vector.broadcast %cst_90 : f32 to vector<2x32xf32>
    %122 = arith.maximumf %120, %121 : vector<2x32xf32>
    %c0_91 = arith.constant 0 : index
    %c0_92 = arith.constant 0 : index
    %123 = vector.load %arg13[%c0_91, %c0_92] : memref<32x4xf32, #tpu.memory_space<vmem>>, vector<32x4xf32>
    %cst_93 = arith.constant dense<0.000000e+00> : vector<2x4xf32>
    %124 = tpu.matmul %122, %123, %cst_93 {dimension_numbers = #tpu.dot_dimension_numbers<[1], [0], [0], [1], [0, 0, 1, 1], [], []>} : vector<2x32xf32>, vector<32x4xf32>, vector<2x4xf32> -> vector<2x4xf32>
    %c0_94 = arith.constant 0 : index
    %c0_95 = arith.constant 0 : index
    %125 = vector.load %arg14[%c0_94, %c0_95] : memref<1x4xf32, #tpu.memory_space<vmem>>, vector<1x4xf32>
    %126 = vector.broadcast %125 : vector<1x4xf32> to vector<2x4xf32>
    %127 = arith.addf %124, %126 : vector<2x4xf32>
    %cst_96 = arith.constant dense<0xFF800000> : vector<2xf32>
    %128 = vector.multi_reduction <maximumf>, %127, %cst_96 [1] : vector<2x4xf32> to vector<2xf32>
    %129 = vector.shape_cast %128 : vector<2xf32> to vector<2x1xf32>
    %130 = vector.broadcast %129 : vector<2x1xf32> to vector<2x4xf32>
    %131 = arith.subf %127, %130 : vector<2x4xf32>
    %132 = math.exp %131 : vector<2x4xf32>
    %cst_97 = arith.constant dense<0.000000e+00> : vector<2xf32>
    %133 = vector.multi_reduction <add>, %132, %cst_97 [1] : vector<2x4xf32> to vector<2xf32>
    %134 = vector.shape_cast %133 : vector<2xf32> to vector<2x1xf32>
    %135 = math.log %134 : vector<2x1xf32>
    %136 = arith.addf %129, %135 : vector<2x1xf32>
    %137 = vector.broadcast %136 : vector<2x1xf32> to vector<2x4xf32>
    %138 = arith.subf %127, %137 : vector<2x4xf32>
    %c0_98 = arith.constant 0 : index
    %c0_99 = arith.constant 0 : index
    %139 = vector.load %arg15[%c0_98, %c0_99] : memref<2x4xf32, #tpu.memory_space<vmem>>, vector<2x4xf32>
    tpu.vector_store %arg15[%c0_98, %c0_99], %138 {strides = array<i32>} : memref<2x4xf32, #tpu.memory_space<vmem>>, vector<2x4xf32>,
    return
  }
}

</mosaic_0001>

<llo_original>
// kernel: tpu_custom_call.1
$region0: #{tpu_custom_call.1}
  #allocation0 [shape = 'u32[]', space=smem, size = 0x4, offset = 0x4, fixed_abs, tag = 'smem constant byte address 0x4 - core index']
  #allocation1 [shape = 'u32[144,128]{1,0:T(1,128)}', space=vmem, size = 0x12000, scoped, tag = 'internal scratch']
  %s0 = inlined_call_operand.hbm [shape: f32[2,8,32], index: 0, kind: input, shape index: {}]
  %s1 = inlined_call_operand.vmem [shape: f32[2,6,32], index: 1, kind: input, shape index: {}]
  %s2 = inlined_call_operand.hbm [shape: f32[2,8,12], index: 2, kind: input, shape index: {}]
  %s3 = inlined_call_operand.vmem [shape: f32[2,6,16], index: 3, kind: input, shape index: {}]
  %s4 = inlined_call_operand.vmem [shape: f32[2,32,32], index: 4, kind: input, shape index: {}]
  %s5 = inlined_call_operand.hbm [shape: f32[2,32,32], index: 5, kind: input, shape index: {}]
  %s6 = inlined_call_operand.vmem [shape: f32[2,1,32], index: 6, kind: input, shape index: {}]
  %s7 = inlined_call_operand.hbm [shape: f32[2,32,32], index: 7, kind: input, shape index: {}]
  %s8 = inlined_call_operand.vmem [shape: f32[2,1,32], index: 8, kind: input, shape index: {}]
  %s9 = inlined_call_operand.hbm [shape: f32[4,32,32], index: 9, kind: input, shape index: {}]
  %s10 = inlined_call_operand.vmem [shape: f32[1,32], index: 10, kind: input, shape index: {}]
  %s11 = inlined_call_operand.vmem [shape: f32[32,32], index: 11, kind: input, shape index: {}]
  %s12 = inlined_call_operand.vmem [shape: f32[1,32], index: 12, kind: input, shape index: {}]
  %s13 = inlined_call_operand.vmem [shape: f32[32,4], index: 13, kind: input, shape index: {}]
  %s14 = inlined_call_operand.vmem [shape: f32[1,4], index: 14, kind: input, shape index: {}]
  %s15 = inlined_call_operand.hbm [shape: f32[2,4], index: 15, kind: output, shape index: {}]
  %s16 = sld [smem:[#allocation0]]
  $region90: #{tpu_custom_call.1} parent=0
    _
  %s18 = ssub.s32 1, %s16
  %s19 = scalar_select 0, %s18, %s16
  $region1: #{tpu_custom_call.1} parent=0
    #allocation2 [shape = 'u8[8192]{0}', space=vmem, size = 0x2000, scoped, tag = 'input window, operand 0, single buffered']
    #allocation3 [shape = 's32[1]{0}', space=sflag, size = 0x4, scoped, tag = 'scoped memory for tpu_custom_call.1']
    #allocation4 [shape = 's32[1]{0}', space=sflag, size = 0x4, scoped, tag = 'scoped memory for tpu_custom_call.1']
    #allocation5 [shape = 'u8[8192]{0}', space=vmem, size = 0x2000, scoped, tag = 'input window, operand 2, single buffered']
    #allocation6 [shape = 's32[1]{0}', space=sflag, size = 0x4, scoped, tag = 'scoped memory for tpu_custom_call.1']
    #allocation7 [shape = 'u8[32768]{0}', space=vmem, size = 0x8000, scoped, tag = 'input window, operand 5, single buffered']
    #allocation8 [shape = 'u8[32768]{0}', space=vmem, size = 0x8000, scoped, tag = 'input window, operand 7, single buffered']
    #allocation9 [shape = 's32[1]{0}', space=sflag, size = 0x4, scoped, tag = 'scoped memory for tpu_custom_call.1']
    #allocation10 [shape = 'u8[65536]{0}', space=vmem, size = 0x10000, scoped, tag = 'input window, operand 9, single buffered']
    #allocation11 [shape = 'u8[1024]{0}', space=vmem, size = 0x400, scoped, tag = 'output window, operand 0, single buffered']
    %20 = vsyncpa [#allocation3], 0
    %21 = vsyncpa [#allocation6], 0
    %22 = vsyncpa [#allocation9], 0
    %23 = vsyncpa [#allocation4], 0
    // Predicated region
    $region2: #{tpu_custom_call.1} parent=1 // pred_check
      _
    $region3: #{tpu_custom_call.1} parent=1 // pred_check_branch
      %25 = sbr.rel (0) target = $region5
    $region4: #{tpu_custom_call.1} parent=1 // pred_region
      %s27 = ssub.s32 256, 256
      %28 = vsyncadd [#allocation3], %s27
      %s29 = sshll.u32 [#allocation2], 4
      %s30 = int_to_ptr.vmem [resolvable:$true] %s29
      %35 = dma.hbm_to_vmem [thread:$0]  %s0, 256, %s30, [#allocation3], 128, 128, 8
    $region5: #{tpu_custom_call.1} parent=1 // pred_fallthru
      _
    // Predicated region
    $region6: #{tpu_custom_call.1} parent=1 // pred_check
      _
    $region7: #{tpu_custom_call.1} parent=1 // pred_check_branch
      %37 = sbr.rel (0) target = $region9
    $region8: #{tpu_custom_call.1} parent=1 // pred_region
      _
    $region9: #{tpu_custom_call.1} parent=1 // pred_fallthru
      _
    // Predicated region
    $region10: #{tpu_custom_call.1} parent=1 // pred_check
      _
    $region11: #{tpu_custom_call.1} parent=1 // pred_check_branch
      %39 = sbr.rel (0) target = $region13
    $region12: #{tpu_custom_call.1} parent=1 // pred_region
      %s41 = ssub.s32 256, 256
      %42 = vsyncadd [#allocation6], %s41
      %s43 = sshll.u32 [#allocation5], 4
      %s44 = int_to_ptr.vmem [resolvable:$true] %s43
      %49 = dma.hbm_to_vmem [thread:$0]  %s2, 256, %s44, [#allocation6], 128, 128, 8
    $region13: #{tpu_custom_call.1} parent=1 // pred_fallthru
      _
    // Predicated region
    $region14: #{tpu_custom_call.1} parent=1 // pred_check
      _
    $region15: #{tpu_custom_call.1} parent=1 // pred_check_branch
      %51 = sbr.rel (0) target = $region17
    $region16: #{tpu_custom_call.1} parent=1 // pred_region
      _
    $region17: #{tpu_custom_call.1} parent=1 // pred_fallthru
      _
    // Predicated region
    $region18: #{tpu_custom_call.1} parent=1 // pred_check
      _
    $region19: #{tpu_custom_call.1} parent=1 // pred_check_branch
      %53 = sbr.rel (0) target = $region21
    $region20: #{tpu_custom_call.1} parent=1 // pred_region
      _
    $region21: #{tpu_custom_call.1} parent=1 // pred_fallthru
      _
    // Predicated region
    $region22: #{tpu_custom_call.1} parent=1 // pred_check
      _
    $region23: #{tpu_custom_call.1} parent=1 // pred_check_branch
      %55 = sbr.rel (0) target = $region25
    $region24: #{tpu_custom_call.1} parent=1 // pred_region
      %s57 = ssub.s32 1024, 1024
      %58 = vsyncadd [#allocation6], %s57
      %s59 = sshll.u32 [#allocation7], 4
      %s60 = int_to_ptr.vmem [resolvable:$true] %s59
      %65 = dma.hbm_to_vmem [thread:$0]  %s5, 1024, %s60, [#allocation6], 128, 128, 8
    $region25: #{tpu_custom_call.1} parent=1 // pred_fallthru
      _
    // Predicated region
    $region26: #{tpu_custom_call.1} parent=1 // pred_check
      _
    $region27: #{tpu_custom_call.1} parent=1 // pred_check_branch
      %67 = sbr.rel (0) target = $region29
    $region28: #{tpu_custom_call.1} parent=1 // pred_region
      _
    $region29: #{tpu_custom_call.1} parent=1 // pred_fallthru
      _
    // Predicated region
    $region30: #{tpu_custom_call.1} parent=1 // pred_check
      _
    $region31: #{tpu_custom_call.1} parent=1 // pred_check_branch
      %69 = sbr.rel (0) target = $region33
    $region32: #{tpu_custom_call.1} parent=1 // pred_region
      %s71 = ssub.s32 1024, 1024
      %72 = vsyncadd [#allocation9], %s71
      %s73 = sshll.u32 [#allocation8], 4
      %s74 = int_to_ptr.vmem [resolvable:$true] %s73
      %79 = dma.hbm_to_vmem [thread:$0]  %s7, 1024, %s74, [#allocation9], 128, 128, 8
    $region33: #{tpu_custom_call.1} parent=1 // pred_fallthru
      _
    // Predicated region
    $region34: #{tpu_custom_call.1} parent=1 // pred_check
      _
    $region35: #{tpu_custom_call.1} parent=1 // pred_check_branch
      %81 = sbr.rel (0) target = $region37
    $region36: #{tpu_custom_call.1} parent=1 // pred_region
      _
    $region37: #{tpu_custom_call.1} parent=1 // pred_fallthru
      _
    // Predicated region
    $region38: #{tpu_custom_call.1} parent=1 // pred_check
      _
    $region39: #{tpu_custom_call.1} parent=1 // pred_check_branch
      %83 = sbr.rel (0) target = $region41
    $region40: #{tpu_custom_call.1} parent=1 // pred_region
      %s85 = ssub.s32 2048, 2048
      %86 = vsyncadd [#allocation9], %s85
      %s87 = sshll.u32 [#allocation10], 4
      %s88 = int_to_ptr.vmem [resolvable:$true] %s87
      %93 = dma.hbm_to_vmem [thread:$0]  %s9, 2048, %s88, [#allocation9], 128, 128, 8
    $region41: #{tpu_custom_call.1} parent=1 // pred_fallthru
      _
    // Predicated region
    $region42: #{tpu_custom_call.1} parent=1 // pred_check
      _
    $region43: #{tpu_custom_call.1} parent=1 // pred_check_branch
      %95 = sbr.rel (0) target = $region45
    $region44: #{tpu_custom_call.1} parent=1 // pred_region
      _
    $region45: #{tpu_custom_call.1} parent=1 // pred_fallthru
      _
    // Predicated region
    $region46: #{tpu_custom_call.1} parent=1 // pred_check
      _
    $region47: #{tpu_custom_call.1} parent=1 // pred_check_branch
      %97 = sbr.rel (0) target = $region49
    $region48: #{tpu_custom_call.1} parent=1 // pred_region
      _
    $region49: #{tpu_custom_call.1} parent=1 // pred_fallthru
      _
    // Predicated region
    $region50: #{tpu_custom_call.1} parent=1 // pred_check
      _
    $region51: #{tpu_custom_call.1} parent=1 // pred_check_branch
      %99 = sbr.rel (0) target = $region53
    $region52: #{tpu_custom_call.1} parent=1 // pred_region
      _
    $region53: #{tpu_custom_call.1} parent=1 // pred_fallthru
      _
    // Predicated region
    $region54: #{tpu_custom_call.1} parent=1 // pred_check
      _
    $region55: #{tpu_custom_call.1} parent=1 // pred_check_branch
      %101 = sbr.rel (0) target = $region57
    $region56: #{tpu_custom_call.1} parent=1 // pred_region
      _
    $region57: #{tpu_custom_call.1} parent=1 // pred_fallthru
      _
    // Predicated region
    $region58: #{tpu_custom_call.1} parent=1 // pred_check
      _
    $region59: #{tpu_custom_call.1} parent=1 // pred_check_branch
      %103 = sbr.rel (0) target = $region61
    $region60: #{tpu_custom_call.1} parent=1 // pred_region
      _
    $region61: #{tpu_custom_call.1} parent=1 // pred_fallthru
      _
    // Predicated region
    $region62: #{tpu_custom_call.1} parent=1 // pred_check
      _
    $region63: #{tpu_custom_call.1} parent=1 // pred_check_branch
      %105 = sbr.rel (0) target = $region65
    $region64: #{tpu_custom_call.1} parent=1 // pred_region
      %106 = dma.done [#allocation3], 256
    $region65: #{tpu_custom_call.1} parent=1 // pred_fallthru
      _
    // Predicated region
    $region66: #{tpu_custom_call.1} parent=1 // pred_check
      _
    $region67: #{tpu_custom_call.1} parent=1 // pred_check_branch
      %108 = sbr.rel (0) target = $region69
    $region68: #{tpu_custom_call.1} parent=1 // pred_region
      %109 = dma.done [#allocation6], 256
    $region69: #{tpu_custom_call.1} parent=1 // pred_fallthru
      _
    // Predicated region
    $region70: #{tpu_custom_call.1} parent=1 // pred_check
      _
    $region71: #{tpu_custom_call.1} parent=1 // pred_check_branch
      %111 = sbr.rel (0) target = $region73
    $region72: #{tpu_custom_call.1} parent=1 // pred_region
      %112 = dma.done [#allocation6], 1024
    $region73: #{tpu_custom_call.1} parent=1 // pred_fallthru
      _
    // Predicated region
    $region74: #{tpu_custom_call.1} parent=1 // pred_check
      _
    $region75: #{tpu_custom_call.1} parent=1 // pred_check_branch
      %114 = sbr.rel (0) target = $region77
    $region76: #{tpu_custom_call.1} parent=1 // pred_region
      %115 = dma.done [#allocation9], 1024
    $region77: #{tpu_custom_call.1} parent=1 // pred_fallthru
      _
    // Predicated region
    $region78: #{tpu_custom_call.1} parent=1 // pred_check
      _
    $region79: #{tpu_custom_call.1} parent=1 // pred_check_branch
      %117 = sbr.rel (0) target = $region81
    $region80: #{tpu_custom_call.1} parent=1 // pred_region
      %118 = dma.done [#allocation9], 2048
    $region81: #{tpu_custom_call.1} parent=1 // pred_fallthru
      _
    %v119 = vld [vmem:[#allocation2] sm:$0xff]
    %v120 = vld [vmem:[#allocation2 + $0x8] sm:$0xff]
    %v121 = vld [vmem:[%s1] sm:$0x3f]
    %v122 = vld [vmem:[%s1 + $0x8] sm:$0x3f]
    %v123 = vld [vmem:[#allocation5] sm:$0xff]
    %v124 = vld [vmem:[#allocation5 + $0x8] sm:$0xff]
    %v125 = vld [vmem:[%s3] sm:$0x3f]
    %v126 = vld [vmem:[%s3 + $0x8] sm:$0x3f]
    %v129 = vcombine.high %v121, %v121
    %v131 = vunpack.c.l.s4 1983009808
    %v132 = vunpack.c.0.s8 %v131
    %v133 = vlaneseq
    %v134 = vshrl.u32 %v133, 7
    %v135 = vsub.s32 %v132, %v134
    %v136 = vrot.slane %v121, %v135
    %v138 = vunpack.c.l.s4 1983009808
    %v139 = vunpack.c.0.s8 %v138
    %v140 = vlaneseq
    %v141 = vshrl.u32 %v140, 7
    %v142 = vsub.s32 %v139, %v141
    %v143 = vrot.slane %v129, %v142
    %v144 = vcombine.high %v136, %v136
    %v145 = vcombine.high %v122, %v122
    %v147 = vunpack.c.l.s4 1983009808
    %v148 = vunpack.c.0.s8 %v147
    %v149 = vlaneseq
    %v150 = vshrl.u32 %v149, 7
    %v151 = vsub.s32 %v148, %v150
    %v152 = vrot.slane %v122, %v151
    %v154 = vunpack.c.l.s4 1983009808
    %v155 = vunpack.c.0.s8 %v154
    %v156 = vlaneseq
    %v157 = vshrl.u32 %v156, 7
    %v158 = vsub.s32 %v155, %v157
    %v159 = vrot.slane %v145, %v158
    %v160 = vcombine.high %v152, %v152
    %vm161 = vcmask 48128
    %v163 = vsel %vm161, %v123, 0
    %vm165 = vcmask 1045504
    %v166 = vsel %vm165, %v121, 0
    %168 = vmatprep.subr.mxu0 0.0
    %169 = vmatpush1.msra.mxu0 0.0
    %170 = vmatprep.subr.mxu0 0.0
    %171 = vmatpush1.msra.mxu0 0.0
    %172 = vmatprep.subr.mxu0 0.0
    %173 = vmatpush1.msra.mxu0 0.0
    %174 = vmatprep.subr.mxu0 0.0
    %175 = vmatpush1.msra.mxu0 0.0
    %176 = vmatprep.subr.mxu0 0.0
    %177 = vmatpush1.msra.mxu0 0.0
    %178 = vmatprep.subr.mxu0 0.0
    %179 = vmatpush1.msra.mxu0 0.0
    %180 = vmatprep.subr.mxu0 0.0
    %181 = vmatpush1.msra.mxu0 0.0
    %182 = vmatprep.subr.mxu0 0.0
    %183 = vmatpush1.msra.mxu0 0.0
    %184 = vmatprep.subr.mxu0 0.0
    %185 = vmatpush1.msra.mxu0 0.0
    %186 = vmatprep.subr.mxu0 0.0
    %187 = vmatpush1.msra.mxu0 0.0
    %188 = vmatprep.subr.mxu0 0.0
    %189 = vmatpush1.msra.mxu0 0.0
    %190 = vmatprep.subr.mxu0 0.0
    %191 = vmatpush1.msra.mxu0 0.0
    %192 = vmatprep.subr.mxu0 0.0
    %193 = vmatpush1.msra.mxu0 0.0
    %194 = vmatprep.subr.mxu0 0.0
    %195 = vmatpush1.msra.mxu0 0.0
    %196 = vmatprep.subr.mxu0 0.0
    %197 = vmatpush1.msra.mxu0 0.0
    %198 = vmatprep.subr.mxu0 0.0
    %199 = vmatpush1.msra.mxu0 %v166
    %200 = vmatprep.subr.mxu0 0.0
    %201 = vmatpush2.msra.mxu0 0.0
    %202 = vmatprep.subr.mxu0 0.0
    %203 = vmatpush2.msra.mxu0 0.0
    %204 = vmatprep.subr.mxu0 0.0
    %205 = vmatpush2.msra.mxu0 0.0
    %206 = vmatprep.subr.mxu0 0.0
    %207 = vmatpush2.msra.mxu0 0.0
    %208 = vmatprep.subr.mxu0 0.0
    %209 = vmatpush2.msra.mxu0 0.0
    %210 = vmatprep.subr.mxu0 0.0
    %211 = vmatpush2.msra.mxu0 0.0
    %212 = vmatprep.subr.mxu0 0.0
    %213 = vmatpush2.msra.mxu0 0.0
    %214 = vmatprep.subr.mxu0 0.0
    %215 = vmatpush2.msra.mxu0 0.0
    %216 = vmatprep.subr.mxu0 0.0
    %217 = vmatpush2.msra.mxu0 0.0
    %218 = vmatprep.subr.mxu0 0.0
    %219 = vmatpush2.msra.mxu0 0.0
    %220 = vmatprep.subr.mxu0 0.0
    %221 = vmatpush2.msra.mxu0 0.0
    %222 = vmatprep.subr.mxu0 0.0
    %223 = vmatpush2.msra.mxu0 0.0
    %224 = vmatprep.subr.mxu0 0.0
    %225 = vmatpush2.msra.mxu0 0.0
    %226 = vmatprep.subr.mxu0 0.0
    %227 = vmatpush2.msra.mxu0 0.0
    %228 = vmatprep.subr.mxu0 0.0
    %229 = vmatpush2.msra.mxu0 0.0
    %230 = vmatprep.subr.mxu0 0.0
    %231 = vmatpush2.msra.mxu0 0.0
    %232 = vmatprep.mubr.f32.mxu0 0.0
    %233 = vmatmul.mubr.f32.gmra.mxu0 %v163
    %v234 = vpop.f32.mrf.mxu0
    %v235 = vadd.f32 0.0, %v234
    %v236 = vpop.f32.mrf.mxu0
    %237 = vdwg.mxu0
    %v239 = vsel %vm161, %v124, 0
    %v241 = vsel %vm165, %v122, 0
    %243 = vmatprep.subr.mxu0 0.0
    %244 = vmatpush1.msra.mxu0 0.0
    %245 = vmatprep.subr.mxu0 0.0
    %246 = vmatpush1.msra.mxu0 0.0
    %247 = vmatprep.subr.mxu0 0.0
    %248 = vmatpush1.msra.mxu0 0.0
    %249 = vmatprep.subr.mxu0 0.0
    %250 = vmatpush1.msra.mxu0 0.0
    %251 = vmatprep.subr.mxu0 0.0
    %252 = vmatpush1.msra.mxu0 0.0
    %253 = vmatprep.subr.mxu0 0.0
    %254 = vmatpush1.msra.mxu0 0.0
    %255 = vmatprep.subr.mxu0 0.0
    %256 = vmatpush1.msra.mxu0 0.0
    %257 = vmatprep.subr.mxu0 0.0
    %258 = vmatpush1.msra.mxu0 0.0
    %259 = vmatprep.subr.mxu0 0.0
    %260 = vmatpush1.msra.mxu0 0.0
    %261 = vmatprep.subr.mxu0 0.0
    %262 = vmatpush1.msra.mxu0 0.0
    %263 = vmatprep.subr.mxu0 0.0
    %264 = vmatpush1.msra.mxu0 0.0
    %265 = vmatprep.subr.mxu0 0.0
    %266 = vmatpush1.msra.mxu0 0.0
    %267 = vmatprep.subr.mxu0 0.0
    %268 = vmatpush1.msra.mxu0 0.0
    %269 = vmatprep.subr.mxu0 0.0
    %270 = vmatpush1.msra.mxu0 0.0
    %271 = vmatprep.subr.mxu0 0.0
    %272 = vmatpush1.msra.mxu0 0.0
    %273 = vmatprep.subr.mxu0 0.0
    %274 = vmatpush1.msra.mxu0 %v241
    %275 = vmatprep.subr.mxu0 0.0
    %276 = vmatpush2.msra.mxu0 0.0
    %277 = vmatprep.subr.mxu0 0.0
    %278 = vmatpush2.msra.mxu0 0.0
    %279 = vmatprep.subr.mxu0 0.0
    %280 = vmatpush2.msra.mxu0 0.0
    %281 = vmatprep.subr.mxu0 0.0
    %282 = vmatpush2.msra.mxu0 0.0
    %283 = vmatprep.subr.mxu0 0.0
    %284 = vmatpush2.msra.mxu0 0.0
    %285 = vmatprep.subr.mxu0 0.0
    %286 = vmatpush2.msra.mxu0 0.0
    %287 = vmatprep.subr.mxu0 0.0
    %288 = vmatpush2.msra.mxu0 0.0
    %289 = vmatprep.subr.mxu0 0.0
    %290 = vmatpush2.msra.mxu0 0.0
    %291 = vmatprep.subr.mxu0 0.0
    %292 = vmatpush2.msra.mxu0 0.0
    %293 = vmatprep.subr.mxu0 0.0
    %294 = vmatpush2.msra.mxu0 0.0
    %295 = vmatprep.subr.mxu0 0.0
    %296 = vmatpush2.msra.mxu0 0.0
    %297 = vmatprep.subr.mxu0 0.0
    %298 = vmatpush2.msra.mxu0 0.0
    %299 = vmatprep.subr.mxu0 0.0
    %300 = vmatpush2.msra.mxu0 0.0
    %301 = vmatprep.subr.mxu0 0.0
    %302 = vmatpush2.msra.mxu0 0.0
    %303 = vmatprep.subr.mxu0 0.0
    %304 = vmatpush2.msra.mxu0 0.0
    %305 = vmatprep.subr.mxu0 0.0
    %306 = vmatpush2.msra.mxu0 0.0
    %307 = vmatprep.mubr.f32.mxu0 0.0
    %308 = vmatmul.mubr.f32.gmra.mxu0 %v239
    %v309 = vpop.f32.mrf.mxu0
    %v310 = vadd.f32 0.0, %v309
    %v311 = vpop.f32.mrf.mxu0
    %312 = vdwg.mxu0
    %vm313 = vcmask 64512
    %v315 = vsel %vm313, %v125, 0
    %317 = vmatprep.subr.mxu0 0.0
    %318 = vmatpush1.msra.mxu0 0.0
    %319 = vmatprep.subr.mxu0 0.0
    %320 = vmatpush1.msra.mxu0 0.0
    %321 = vmatprep.subr.mxu0 0.0
    %322 = vmatpush1.msra.mxu0 0.0
    %323 = vmatprep.subr.mxu0 0.0
    %324 = vmatpush1.msra.mxu0 0.0
    %325 = vmatprep.subr.mxu0 0.0
    %326 = vmatpush1.msra.mxu0 0.0
    %327 = vmatprep.subr.mxu0 0.0
    %328 = vmatpush1.msra.mxu0 0.0
    %329 = vmatprep.subr.mxu0 0.0
    %330 = vmatpush1.msra.mxu0 0.0
    %331 = vmatprep.subr.mxu0 0.0
    %332 = vmatpush1.msra.mxu0 0.0
    %333 = vmatprep.subr.mxu0 0.0
    %334 = vmatpush1.msra.mxu0 0.0
    %335 = vmatprep.subr.mxu0 0.0
    %336 = vmatpush1.msra.mxu0 0.0
    %337 = vmatprep.subr.mxu0 0.0
    %338 = vmatpush1.msra.mxu0 0.0
    %339 = vmatprep.subr.mxu0 0.0
    %340 = vmatpush1.msra.mxu0 0.0
    %341 = vmatprep.subr.mxu0 0.0
    %342 = vmatpush1.msra.mxu0 0.0
    %343 = vmatprep.subr.mxu0 0.0
    %344 = vmatpush1.msra.mxu0 0.0
    %345 = vmatprep.subr.mxu0 0.0
    %346 = vmatpush1.msra.mxu0 0.0
    %347 = vmatprep.subr.mxu0 0.0
    %348 = vmatpush1.msra.mxu0 %v119
    %349 = vmatprep.subr.mxu0 0.0
    %350 = vmatpush2.msra.mxu0 0.0
    %351 = vmatprep.subr.mxu0 0.0
    %352 = vmatpush2.msra.mxu0 0.0
    %353 = vmatprep.subr.mxu0 0.0
    %354 = vmatpush2.msra.mxu0 0.0
    %355 = vmatprep.subr.mxu0 0.0
    %356 = vmatpush2.msra.mxu0 0.0
    %357 = vmatprep.subr.mxu0 0.0
    %358 = vmatpush2.msra.mxu0 0.0
    %359 = vmatprep.subr.mxu0 0.0
    %360 = vmatpush2.msra.mxu0 0.0
    %361 = vmatprep.subr.mxu0 0.0
    %362 = vmatpush2.msra.mxu0 0.0
    %363 = vmatprep.subr.mxu0 0.0
    %364 = vmatpush2.msra.mxu0 0.0
    %365 = vmatprep.subr.mxu0 0.0
    %366 = vmatpush2.msra.mxu0 0.0
    %367 = vmatprep.subr.mxu0 0.0
    %368 = vmatpush2.msra.mxu0 0.0
    %369 = vmatprep.subr.mxu0 0.0
    %370 = vmatpush2.msra.mxu0 0.0
    %371 = vmatprep.subr.mxu0 0.0
    %372 = vmatpush2.msra.mxu0 0.0
    %373 = vmatprep.subr.mxu0 0.0
    %374 = vmatpush2.msra.mxu0 0.0
    %375 = vmatprep.subr.mxu0 0.0
    %376 = vmatpush2.msra.mxu0 0.0
    %377 = vmatprep.subr.mxu0 0.0
    %378 = vmatpush2.msra.mxu0 0.0
    %379 = vmatprep.subr.mxu0 0.0
    %380 = vmatpush2.msra.mxu0 0.0
    %381 = vmatprep.mubr.f32.mxu0 0.0
    %382 = vmatmul.mubr.f32.gmra.mxu0 %v315
    %v383 = vpop.f32.mrf.mxu0
    %v384 = vadd.f32 0.0, %v383
    %v385 = vpop.f32.mrf.mxu0
    %386 = vdwg.mxu0
    %v388 = vsel %vm313, %v126, 0
    %390 = vmatprep.subr.mxu0 0.0
    %391 = vmatpush1.msra.mxu0 0.0
    %392 = vmatprep.subr.mxu0 0.0
    %393 = vmatpush1.msra.mxu0 0.0
    %394 = vmatprep.subr.mxu0 0.0
    %395 = vmatpush1.msra.mxu0 0.0
    %396 = vmatprep.subr.mxu0 0.0
    %397 = vmatpush1.msra.mxu0 0.0
    %398 = vmatprep.subr.mxu0 0.0
    %399 = vmatpush1.msra.mxu0 0.0
    %400 = vmatprep.subr.mxu0 0.0
    %401 = vmatpush1.msra.mxu0 0.0
    %402 = vmatprep.subr.mxu0 0.0
    %403 = vmatpush1.msra.mxu0 0.0
    %404 = vmatprep.subr.mxu0 0.0
    %405 = vmatpush1.msra.mxu0 0.0
    %406 = vmatprep.subr.mxu0 0.0
    %407 = vmatpush1.msra.mxu0 0.0
    %408 = vmatprep.subr.mxu0 0.0
    %409 = vmatpush1.msra.mxu0 0.0
    %410 = vmatprep.subr.mxu0 0.0
    %411 = vmatpush1.msra.mxu0 0.0
    %412 = vmatprep.subr.mxu0 0.0
    %413 = vmatpush1.msra.mxu0 0.0
    %414 = vmatprep.subr.mxu0 0.0
    %415 = vmatpush1.msra.mxu0 0.0
    %416 = vmatprep.subr.mxu0 0.0
    %417 = vmatpush1.msra.mxu0 0.0
    %418 = vmatprep.subr.mxu0 0.0
    %419 = vmatpush1.msra.mxu0 0.0
    %420 = vmatprep.subr.mxu0 0.0
    %421 = vmatpush1.msra.mxu0 %v120
    %422 = vmatprep.subr.mxu0 0.0
    %423 = vmatpush2.msra.mxu0 0.0
    %424 = vmatprep.subr.mxu0 0.0
    %425 = vmatpush2.msra.mxu0 0.0
    %426 = vmatprep.subr.mxu0 0.0
    %427 = vmatpush2.msra.mxu0 0.0
    %428 = vmatprep.subr.mxu0 0.0
    %429 = vmatpush2.msra.mxu0 0.0
    %430 = vmatprep.subr.mxu0 0.0
    %431 = vmatpush2.msra.mxu0 0.0
    %432 = vmatprep.subr.mxu0 0.0
    %433 = vmatpush2.msra.mxu0 0.0
    %434 = vmatprep.subr.mxu0 0.0
    %435 = vmatpush2.msra.mxu0 0.0
    %436 = vmatprep.subr.mxu0 0.0
    %437 = vmatpush2.msra.mxu0 0.0
    %438 = vmatprep.subr.mxu0 0.0
    %439 = vmatpush2.msra.mxu0 0.0
    %440 = vmatprep.subr.mxu0 0.0
    %441 = vmatpush2.msra.mxu0 0.0
    %442 = vmatprep.subr.mxu0 0.0
    %443 = vmatpush2.msra.mxu0 0.0
    %444 = vmatprep.subr.mxu0 0.0
    %445 = vmatpush2.msra.mxu0 0.0
    %446 = vmatprep.subr.mxu0 0.0
    %447 = vmatpush2.msra.mxu0 0.0
    %448 = vmatprep.subr.mxu0 0.0
    %449 = vmatpush2.msra.mxu0 0.0
    %450 = vmatprep.subr.mxu0 0.0
    %451 = vmatpush2.msra.mxu0 0.0
    %452 = vmatprep.subr.mxu0 0.0
    %453 = vmatpush2.msra.mxu0 0.0
    %454 = vmatprep.mubr.f32.mxu0 0.0
    %455 = vmatmul.mubr.f32.gmra.mxu0 %v388
    %v456 = vpop.f32.mrf.mxu0
    %v457 = vadd.f32 0.0, %v456
    %v458 = vpop.f32.mrf.mxu0
    %459 = vdwg.mxu0
    %v460 = vld [vmem:[%s4] sm:$0xff]
    %v461 = vld [vmem:[%s4 + $0x8] sm:$0xff]
    %v462 = vld [vmem:[%s4 + $0x10] sm:$0xff]
    %v463 = vld [vmem:[%s4 + $0x18] sm:$0xff]
    %v464 = vld [vmem:[#allocation7] sm:$0xff]
    %v465 = vld [vmem:[#allocation7 + $0x8] sm:$0xff]
    %v466 = vld [vmem:[#allocation7 + $0x10] sm:$0xff]
    %v467 = vld [vmem:[#allocation7 + $0x18] sm:$0xff]
    %v468 = vld [vmem:[%s6] sm:$0x1]
    %v469 = vld [vmem:[#allocation8] sm:$0xff]
    %v470 = vld [vmem:[#allocation8 + $0x8] sm:$0xff]
    %v471 = vld [vmem:[#allocation8 + $0x10] sm:$0xff]
    %v472 = vld [vmem:[#allocation8 + $0x18] sm:$0xff]
    %v473 = vld [vmem:[%s8] sm:$0x1]
    %vm474 = vcmask 261120
    %v476 = vsel %vm474, %v235, 0
    %v479 = vsel %vm474, %v310, 0
    %481 = vmatprep.subr.mxu0 0.0
    %482 = vmatpush1.msra.mxu0 0.0
    %483 = vmatprep.subr.mxu0 0.0
    %484 = vmatpush1.msra.mxu0 0.0
    %485 = vmatprep.subr.mxu0 0.0
    %486 = vmatpush1.msra.mxu0 0.0
    %487 = vmatprep.subr.mxu0 0.0
    %488 = vmatpush1.msra.mxu0 0.0
    %489 = vmatprep.subr.mxu0 0.0
    %490 = vmatpush1.msra.mxu0 0.0
    %491 = vmatprep.subr.mxu0 0.0
    %492 = vmatpush1.msra.mxu0 0.0
    %493 = vmatprep.subr.mxu0 0.0
    %494 = vmatpush1.msra.mxu0 0.0
    %495 = vmatprep.subr.mxu0 0.0
    %496 = vmatpush1.msra.mxu0 0.0
    %497 = vmatprep.subr.mxu0 0.0
    %498 = vmatpush1.msra.mxu0 0.0
    %499 = vmatprep.subr.mxu0 0.0
    %500 = vmatpush1.msra.mxu0 0.0
    %501 = vmatprep.subr.mxu0 0.0
    %502 = vmatpush1.msra.mxu0 0.0
    %503 = vmatprep.subr.mxu0 0.0
    %504 = vmatpush1.msra.mxu0 0.0
    %505 = vmatprep.subr.mxu0 0.0
    %506 = vmatpush1.msra.mxu0 %v467
    %507 = vmatprep.subr.mxu0 0.0
    %508 = vmatpush1.msra.mxu0 %v466
    %509 = vmatprep.subr.mxu0 0.0
    %510 = vmatpush1.msra.mxu0 %v465
    %511 = vmatprep.subr.mxu0 0.0
    %512 = vmatpush1.msra.mxu0 %v464
    %513 = vmatprep.subr.mxu0 0.0
    %514 = vmatpush2.msra.mxu0 0.0
    %515 = vmatprep.subr.mxu0 0.0
    %516 = vmatpush2.msra.mxu0 0.0
    %517 = vmatprep.subr.mxu0 0.0
    %518 = vmatpush2.msra.mxu0 0.0
    %519 = vmatprep.subr.mxu0 0.0
    %520 = vmatpush2.msra.mxu0 0.0
    %521 = vmatprep.subr.mxu0 0.0
    %522 = vmatpush2.msra.mxu0 0.0
    %523 = vmatprep.subr.mxu0 0.0
    %524 = vmatpush2.msra.mxu0 0.0
    %525 = vmatprep.subr.mxu0 0.0
    %526 = vmatpush2.msra.mxu0 0.0
    %527 = vmatprep.subr.mxu0 0.0
    %528 = vmatpush2.msra.mxu0 0.0
    %529 = vmatprep.subr.mxu0 0.0
    %530 = vmatpush2.msra.mxu0 0.0
    %531 = vmatprep.subr.mxu0 0.0
    %532 = vmatpush2.msra.mxu0 0.0
    %533 = vmatprep.subr.mxu0 0.0
    %534 = vmatpush2.msra.mxu0 0.0
    %535 = vmatprep.subr.mxu0 0.0
    %536 = vmatpush2.msra.mxu0 0.0
    %537 = vmatprep.subr.mxu0 0.0
    %538 = vmatpush2.msra.mxu0 0.0
    %539 = vmatprep.subr.mxu0 0.0
    %540 = vmatpush2.msra.mxu0 0.0
    %541 = vmatprep.subr.mxu0 0.0
    %542 = vmatpush2.msra.mxu0 0.0
    %543 = vmatprep.subr.mxu0 0.0
    %544 = vmatpush2.msra.mxu0 0.0
    %545 = vmatprep.mubr.f32.mxu0 0.0
    %546 = vmatmul.mubr.f32.gmra.mxu0 %v476
    %v547 = vpop.f32.mrf.mxu0
    %v548 = vadd.f32 0.0, %v547
    %v549 = vpop.f32.mrf.mxu0
    %550 = vmatprep.mubr.f32.mxu0 0.0
    %551 = vmatmul.mubr.f32.gmra.mxu0 %v479
    %v552 = vpop.f32.mrf.mxu0
    %v553 = vadd.f32 0.0, %v552
    %v554 = vpop.f32.mrf.mxu0
    %555 = vdwg.mxu0
    %v557 = vsel %vm474, %v119, 0
    %v560 = vsel %vm474, %v120, 0
    %562 = vmatprep.subr.mxu0 0.0
    %563 = vmatpush1.msra.mxu0 0.0
    %564 = vmatprep.subr.mxu0 0.0
    %565 = vmatpush1.msra.mxu0 0.0
    %566 = vmatprep.subr.mxu0 0.0
    %567 = vmatpush1.msra.mxu0 0.0
    %568 = vmatprep.subr.mxu0 0.0
    %569 = vmatpush1.msra.mxu0 0.0
    %570 = vmatprep.subr.mxu0 0.0
    %571 = vmatpush1.msra.mxu0 0.0
    %572 = vmatprep.subr.mxu0 0.0
    %573 = vmatpush1.msra.mxu0 0.0
    %574 = vmatprep.subr.mxu0 0.0
    %575 = vmatpush1.msra.mxu0 0.0
    %576 = vmatprep.subr.mxu0 0.0
    %577 = vmatpush1.msra.mxu0 0.0
    %578 = vmatprep.subr.mxu0 0.0
    %579 = vmatpush1.msra.mxu0 0.0
    %580 = vmatprep.subr.mxu0 0.0
    %581 = vmatpush1.msra.mxu0 0.0
    %582 = vmatprep.subr.mxu0 0.0
    %583 = vmatpush1.msra.mxu0 0.0
    %584 = vmatprep.subr.mxu0 0.0
    %585 = vmatpush1.msra.mxu0 0.0
    %586 = vmatprep.subr.mxu0 0.0
    %587 = vmatpush1.msra.mxu0 %v463
    %588 = vmatprep.subr.mxu0 0.0
    %589 = vmatpush1.msra.mxu0 %v462
    %590 = vmatprep.subr.mxu0 0.0
    %591 = vmatpush1.msra.mxu0 %v461
    %592 = vmatprep.subr.mxu0 0.0
    %593 = vmatpush1.msra.mxu0 %v460
    %594 = vmatprep.subr.mxu0 0.0
    %595 = vmatpush2.msra.mxu0 0.0
    %596 = vmatprep.subr.mxu0 0.0
    %597 = vmatpush2.msra.mxu0 0.0
    %598 = vmatprep.subr.mxu0 0.0
    %599 = vmatpush2.msra.mxu0 0.0
    %600 = vmatprep.subr.mxu0 0.0
    %601 = vmatpush2.msra.mxu0 0.0
    %602 = vmatprep.subr.mxu0 0.0
    %603 = vmatpush2.msra.mxu0 0.0
    %604 = vmatprep.subr.mxu0 0.0
    %605 = vmatpush2.msra.mxu0 0.0
    %606 = vmatprep.subr.mxu0 0.0
    %607 = vmatpush2.msra.mxu0 0.0
    %608 = vmatprep.subr.mxu0 0.0
    %609 = vmatpush2.msra.mxu0 0.0
    %610 = vmatprep.subr.mxu0 0.0
    %611 = vmatpush2.msra.mxu0 0.0
    %612 = vmatprep.subr.mxu0 0.0
    %613 = vmatpush2.msra.mxu0 0.0
    %614 = vmatprep.subr.mxu0 0.0
    %615 = vmatpush2.msra.mxu0 0.0
    %616 = vmatprep.subr.mxu0 0.0
    %617 = vmatpush2.msra.mxu0 0.0
    %618 = vmatprep.subr.mxu0 0.0
    %619 = vmatpush2.msra.mxu0 0.0
    %620 = vmatprep.subr.mxu0 0.0
    %621 = vmatpush2.msra.mxu0 0.0
    %622 = vmatprep.subr.mxu0 0.0
    %623 = vmatpush2.msra.mxu0 0.0
    %624 = vmatprep.subr.mxu0 0.0
    %625 = vmatpush2.msra.mxu0 0.0
    %626 = vmatprep.mubr.f32.mxu0 0.0
    %627 = vmatmul.mubr.f32.gmra.mxu0 %v557
    %v628 = vpop.f32.mrf.mxu0
    %v629 = vadd.f32 %v548, %v628
    %v630 = vpop.f32.mrf.mxu0
    %631 = vmatprep.mubr.f32.mxu0 0.0
    %632 = vmatmul.mubr.f32.gmra.mxu0 %v560
    %v633 = vpop.f32.mrf.mxu0
    %v634 = vadd.f32 %v553, %v633
    %v635 = vpop.f32.mrf.mxu0
    %636 = vdwg.mxu0
    %v638 = vlaneseq
    %v639 = vshrl.u32 %v638, 7
    %v640 = vsub.s32 0, %v639
    %v641 = vrot.slane %v468, %v640
    %v643 = vadd.f32 %v629, %v641
    %v644 = vadd.f32 %v634, %v641
    %v645 = vmax.f32 %v643, 0.0
    %v646 = vmax.f32 %v644, 0.0
    %v648 = vlaneseq
    %v649 = vshrl.u32 %v648, 7
    %v650 = vsub.s32 0, %v649
    %v651 = vrot.slane %v473, %v650
    %v654 = vsel %vm474, %v645, 0
    %v657 = vsel %vm474, %v646, 0
    %659 = vmatprep.subr.mxu0 0.0
    %660 = vmatpush1.msra.mxu0 0.0
    %661 = vmatprep.subr.mxu0 0.0
    %662 = vmatpush1.msra.mxu0 0.0
    %663 = vmatprep.subr.mxu0 0.0
    %664 = vmatpush1.msra.mxu0 0.0
    %665 = vmatprep.subr.mxu0 0.0
    %666 = vmatpush1.msra.mxu0 0.0
    %667 = vmatprep.subr.mxu0 0.0
    %668 = vmatpush1.msra.mxu0 0.0
    %669 = vmatprep.subr.mxu0 0.0
    %670 = vmatpush1.msra.mxu0 0.0
    %671 = vmatprep.subr.mxu0 0.0
    %672 = vmatpush1.msra.mxu0 0.0
    %673 = vmatprep.subr.mxu0 0.0
    %674 = vmatpush1.msra.mxu0 0.0
    %675 = vmatprep.subr.mxu0 0.0
    %676 = vmatpush1.msra.mxu0 0.0
    %677 = vmatprep.subr.mxu0 0.0
    %678 = vmatpush1.msra.mxu0 0.0
    %679 = vmatprep.subr.mxu0 0.0
    %680 = vmatpush1.msra.mxu0 0.0
    %681 = vmatprep.subr.mxu0 0.0
    %682 = vmatpush1.msra.mxu0 0.0
    %683 = vmatprep.subr.mxu0 0.0
    %684 = vmatpush1.msra.mxu0 %v472
    %685 = vmatprep.subr.mxu0 0.0
    %686 = vmatpush1.msra.mxu0 %v471
    %687 = vmatprep.subr.mxu0 0.0
    %688 = vmatpush1.msra.mxu0 %v470
    %689 = vmatprep.subr.mxu0 0.0
    %690 = vmatpush1.msra.mxu0 %v469
    %691 = vmatprep.subr.mxu0 0.0
    %692 = vmatpush2.msra.mxu0 0.0
    %693 = vmatprep.subr.mxu0 0.0
    %694 = vmatpush2.msra.mxu0 0.0
    %695 = vmatprep.subr.mxu0 0.0
    %696 = vmatpush2.msra.mxu0 0.0
    %697 = vmatprep.subr.mxu0 0.0
    %698 = vmatpush2.msra.mxu0 0.0
    %699 = vmatprep.subr.mxu0 0.0
    %700 = vmatpush2.msra.mxu0 0.0
    %701 = vmatprep.subr.mxu0 0.0
    %702 = vmatpush2.msra.mxu0 0.0
    %703 = vmatprep.subr.mxu0 0.0
    %704 = vmatpush2.msra.mxu0 0.0
    %705 = vmatprep.subr.mxu0 0.0
    %706 = vmatpush2.msra.mxu0 0.0
    %707 = vmatprep.subr.mxu0 0.0
    %708 = vmatpush2.msra.mxu0 0.0
    %709 = vmatprep.subr.mxu0 0.0
    %710 = vmatpush2.msra.mxu0 0.0
    %711 = vmatprep.subr.mxu0 0.0
    %712 = vmatpush2.msra.mxu0 0.0
    %713 = vmatprep.subr.mxu0 0.0
    %714 = vmatpush2.msra.mxu0 0.0
    %715 = vmatprep.subr.mxu0 0.0
    %716 = vmatpush2.msra.mxu0 0.0
    %717 = vmatprep.subr.mxu0 0.0
    %718 = vmatpush2.msra.mxu0 0.0
    %719 = vmatprep.subr.mxu0 0.0
    %720 = vmatpush2.msra.mxu0 0.0
    %721 = vmatprep.subr.mxu0 0.0
    %722 = vmatpush2.msra.mxu0 0.0
    %723 = vmatprep.mubr.f32.mxu0 0.0
    %724 = vmatmul.mubr.f32.gmra.mxu0 %v654
    %v725 = vpop.f32.mrf.mxu0
    %v726 = vadd.f32 %v651, %v725
    %v727 = vpop.f32.mrf.mxu0
    %728 = vmatprep.mubr.f32.mxu0 0.0
    %729 = vmatmul.mubr.f32.gmra.mxu0 %v657
    %v730 = vpop.f32.mrf.mxu0
    %v731 = vadd.f32 %v651, %v730
    %v732 = vpop.f32.mrf.mxu0
    %733 = vdwg.mxu0
    %v734 = vmax.f32 %v726, 0.0
    %v735 = vmax.f32 %v731, 0.0
    %v736 = vsel %vm474, %v734, 0.0
    %v737 = vrot.slane %v736, 4
    %v738 = vadd.f32 %v736, %v737
    %v739 = vrot.slane %v738, 2
    %v740 = vadd.f32 %v738, %v739
    %v741 = vrot.slane %v740, 1
    %v742 = vadd.f32 %v740, %v741
    %v743 = vsel %vm474, %v735, 0.0
    %v744 = vrot.slane %v743, 4
    %v745 = vadd.f32 %v743, %v744
    %v746 = vrot.slane %v745, 2
    %v747 = vadd.f32 %v745, %v746
    %v748 = vrot.slane %v747, 1
    %v749 = vadd.f32 %v747, %v748
    %v752 = vcombine.high %v384, %v384
    %v754 = vunpack.c.l.s4 1983009808
    %v755 = vunpack.c.0.s8 %v754
    %v756 = vlaneseq
    %v757 = vshrl.u32 %v756, 7
    %v758 = vsub.s32 %v755, %v757
    %v759 = vrot.slane %v384, %v758
    %v761 = vunpack.c.l.s4 1983009808
    %v762 = vunpack.c.0.s8 %v761
    %v763 = vlaneseq
    %v764 = vshrl.u32 %v763, 7
    %v765 = vsub.s32 %v762, %v764
    %v766 = vrot.slane %v752, %v765
    %v767 = vcombine.high %v759, %v759
    %v768 = vcombine.high %v457, %v457
    %v770 = vunpack.c.l.s4 1983009808
    %v771 = vunpack.c.0.s8 %v770
    %v772 = vlaneseq
    %v773 = vshrl.u32 %v772, 7
    %v774 = vsub.s32 %v771, %v773
    %v775 = vrot.slane %v457, %v774
    %v777 = vunpack.c.l.s4 1983009808
    %v778 = vunpack.c.0.s8 %v777
    %v779 = vlaneseq
    %v780 = vshrl.u32 %v779, 7
    %v781 = vsub.s32 %v778, %v780
    %v782 = vrot.slane %v768, %v781
    %v783 = vcombine.high %v775, %v775
    %v784 = vcombine.low %v759, %v767
    %v785 = vcombine.low %v766, %v775
    %v787 = vunpack.c.l.s4 1983009808
    %v788 = vunpack.c.0.s8 %v787
    %v789 = vlaneseq
    %v790 = vshrl.u32 %v789, 7
    %v791 = vsub.s32 %v788, %v790
    %v792 = vrot.slane %v784, %v791
    %v794 = vunpack.c.l.s4 1983009808
    %v795 = vunpack.c.0.s8 %v794
    %v796 = vlaneseq
    %v797 = vshrl.u32 %v796, 7
    %v798 = vsub.s32 %v795, %v797
    %v799 = vrot.slane %v785, %v798
    %v800 = vcombine.low %v792, %v799
    %v801 = vcombine.low %v783, %v782
    %v803 = vunpack.c.l.s4 1983009808
    %v804 = vunpack.c.0.s8 %v803
    %v805 = vlaneseq
    %v806 = vshrl.u32 %v805, 7
    %v807 = vsub.s32 %v804, %v806
    %v808 = vrot.slane %v801, %v807
    %v809 = vsel %vm474, %v800, 0
    %v811 = vsel %vm474, %v808, 0
    %813 = vmatprep.subr.mxu0 0.0
    %814 = vmatpush1.msra.mxu0 0.0
    %815 = vmatprep.subr.mxu0 0.0
    %816 = vmatpush1.msra.mxu0 0.0
    %817 = vmatprep.subr.mxu0 0.0
    %818 = vmatpush1.msra.mxu0 0.0
    %819 = vmatprep.subr.mxu0 0.0
    %820 = vmatpush1.msra.mxu0 0.0
    %821 = vmatprep.subr.mxu0 0.0
    %822 = vmatpush1.msra.mxu0 0.0
    %823 = vmatprep.subr.mxu0 0.0
    %824 = vmatpush1.msra.mxu0 0.0
    %825 = vmatprep.subr.mxu0 0.0
    %826 = vmatpush1.msra.mxu0 0.0
    %827 = vmatprep.subr.mxu0 0.0
    %828 = vmatpush1.msra.mxu0 0.0
    %829 = vmatprep.subr.mxu0 0.0
    %830 = vmatpush1.msra.mxu0 0.0
    %831 = vmatprep.subr.mxu0 0.0
    %832 = vmatpush1.msra.mxu0 0.0
    %833 = vmatprep.subr.mxu0 0.0
    %834 = vmatpush1.msra.mxu0 0.0
    %835 = vmatprep.subr.mxu0 0.0
    %836 = vmatpush1.msra.mxu0 0.0
    %837 = vmatprep.subr.mxu0 0.0
    %838 = vmatpush1.msra.mxu0 %v467
    %839 = vmatprep.subr.mxu0 0.0
    %840 = vmatpush1.msra.mxu0 %v466
    %841 = vmatprep.subr.mxu0 0.0
    %842 = vmatpush1.msra.mxu0 %v465
    %843 = vmatprep.subr.mxu0 0.0
    %844 = vmatpush1.msra.mxu0 %v464
    %845 = vmatprep.subr.mxu0 0.0
    %846 = vmatpush2.msra.mxu0 0.0
    %847 = vmatprep.subr.mxu0 0.0
    %848 = vmatpush2.msra.mxu0 0.0
    %849 = vmatprep.subr.mxu0 0.0
    %850 = vmatpush2.msra.mxu0 0.0
    %851 = vmatprep.subr.mxu0 0.0
    %852 = vmatpush2.msra.mxu0 0.0
    %853 = vmatprep.subr.mxu0 0.0
    %854 = vmatpush2.msra.mxu0 0.0
    %855 = vmatprep.subr.mxu0 0.0
    %856 = vmatpush2.msra.mxu0 0.0
    %857 = vmatprep.subr.mxu0 0.0
    %858 = vmatpush2.msra.mxu0 0.0
    %859 = vmatprep.subr.mxu0 0.0
    %860 = vmatpush2.msra.mxu0 0.0
    %861 = vmatprep.subr.mxu0 0.0
    %862 = vmatpush2.msra.mxu0 0.0
    %863 = vmatprep.subr.mxu0 0.0
    %864 = vmatpush2.msra.mxu0 0.0
    %865 = vmatprep.subr.mxu0 0.0
    %866 = vmatpush2.msra.mxu0 0.0
    %867 = vmatprep.subr.mxu0 0.0
    %868 = vmatpush2.msra.mxu0 0.0
    %869 = vmatprep.subr.mxu0 0.0
    %870 = vmatpush2.msra.mxu0 0.0
    %871 = vmatprep.subr.mxu0 0.0
    %872 = vmatpush2.msra.mxu0 0.0
    %873 = vmatprep.subr.mxu0 0.0
    %874 = vmatpush2.msra.mxu0 0.0
    %875 = vmatprep.subr.mxu0 0.0
    %876 = vmatpush2.msra.mxu0 0.0
    %877 = vmatprep.mubr.f32.mxu0 0.0
    %878 = vmatmul.mubr.f32.gmra.mxu0 %v809
    %v879 = vpop.f32.mrf.mxu0
    %v880 = vadd.f32 0.0, %v879
    %v881 = vpop.f32.mrf.mxu0
    %882 = vmatprep.mubr.f32.mxu0 0.0
    %883 = vmatmul.mubr.f32.gmra.mxu0 %v811
    %v884 = vpop.f32.mrf.mxu0
    %v885 = vadd.f32 0.0, %v884
    %v886 = vpop.f32.mrf.mxu0
    %887 = vdwg.mxu0
    %v888 = vcombine.low %v136, %v144
    %v889 = vcombine.low %v143, %v152
    %v891 = vunpack.c.l.s4 1983009808
    %v892 = vunpack.c.0.s8 %v891
    %v893 = vlaneseq
    %v894 = vshrl.u32 %v893, 7
    %v895 = vsub.s32 %v892, %v894
    %v896 = vrot.slane %v888, %v895
    %v898 = vunpack.c.l.s4 1983009808
    %v899 = vunpack.c.0.s8 %v898
    %v900 = vlaneseq
    %v901 = vshrl.u32 %v900, 7
    %v902 = vsub.s32 %v899, %v901
    %v903 = vrot.slane %v889, %v902
    %v904 = vcombine.low %v896, %v903
    %v905 = vcombine.low %v160, %v159
    %v907 = vunpack.c.l.s4 1983009808
    %v908 = vunpack.c.0.s8 %v907
    %v909 = vlaneseq
    %v910 = vshrl.u32 %v909, 7
    %v911 = vsub.s32 %v908, %v910
    %v912 = vrot.slane %v905, %v911
    %v913 = vsel %vm474, %v904, 0
    %v915 = vsel %vm474, %v912, 0
    %917 = vmatprep.subr.mxu0 0.0
    %918 = vmatpush1.msra.mxu0 0.0
    %919 = vmatprep.subr.mxu0 0.0
    %920 = vmatpush1.msra.mxu0 0.0
    %921 = vmatprep.subr.mxu0 0.0
    %922 = vmatpush1.msra.mxu0 0.0
    %923 = vmatprep.subr.mxu0 0.0
    %924 = vmatpush1.msra.mxu0 0.0
    %925 = vmatprep.subr.mxu0 0.0
    %926 = vmatpush1.msra.mxu0 0.0
    %927 = vmatprep.subr.mxu0 0.0
    %928 = vmatpush1.msra.mxu0 0.0
    %929 = vmatprep.subr.mxu0 0.0
    %930 = vmatpush1.msra.mxu0 0.0
    %931 = vmatprep.subr.mxu0 0.0
    %932 = vmatpush1.msra.mxu0 0.0
    %933 = vmatprep.subr.mxu0 0.0
    %934 = vmatpush1.msra.mxu0 0.0
    %935 = vmatprep.subr.mxu0 0.0
    %936 = vmatpush1.msra.mxu0 0.0
    %937 = vmatprep.subr.mxu0 0.0
    %938 = vmatpush1.msra.mxu0 0.0
    %939 = vmatprep.subr.mxu0 0.0
    %940 = vmatpush1.msra.mxu0 0.0
    %941 = vmatprep.subr.mxu0 0.0
    %942 = vmatpush1.msra.mxu0 %v463
    %943 = vmatprep.subr.mxu0 0.0
    %944 = vmatpush1.msra.mxu0 %v462
    %945 = vmatprep.subr.mxu0 0.0
    %946 = vmatpush1.msra.mxu0 %v461
    %947 = vmatprep.subr.mxu0 0.0
    %948 = vmatpush1.msra.mxu0 %v460
    %949 = vmatprep.subr.mxu0 0.0
    %950 = vmatpush2.msra.mxu0 0.0
    %951 = vmatprep.subr.mxu0 0.0
    %952 = vmatpush2.msra.mxu0 0.0
    %953 = vmatprep.subr.mxu0 0.0
    %954 = vmatpush2.msra.mxu0 0.0
    %955 = vmatprep.subr.mxu0 0.0
    %956 = vmatpush2.msra.mxu0 0.0
    %957 = vmatprep.subr.mxu0 0.0
    %958 = vmatpush2.msra.mxu0 0.0
    %959 = vmatprep.subr.mxu0 0.0
    %960 = vmatpush2.msra.mxu0 0.0
    %961 = vmatprep.subr.mxu0 0.0
    %962 = vmatpush2.msra.mxu0 0.0
    %963 = vmatprep.subr.mxu0 0.0
    %964 = vmatpush2.msra.mxu0 0.0
    %965 = vmatprep.subr.mxu0 0.0
    %966 = vmatpush2.msra.mxu0 0.0
    %967 = vmatprep.subr.mxu0 0.0
    %968 = vmatpush2.msra.mxu0 0.0
    %969 = vmatprep.subr.mxu0 0.0
    %970 = vmatpush2.msra.mxu0 0.0
    %971 = vmatprep.subr.mxu0 0.0
    %972 = vmatpush2.msra.mxu0 0.0
    %973 = vmatprep.subr.mxu0 0.0
    %974 = vmatpush2.msra.mxu0 0.0
    %975 = vmatprep.subr.mxu0 0.0
    %976 = vmatpush2.msra.mxu0 0.0
    %977 = vmatprep.subr.mxu0 0.0
    %978 = vmatpush2.msra.mxu0 0.0
    %979 = vmatprep.subr.mxu0 0.0
    %980 = vmatpush2.msra.mxu0 0.0
    %981 = vmatprep.mubr.f32.mxu0 0.0
    %982 = vmatmul.mubr.f32.gmra.mxu0 %v913
    %v983 = vpop.f32.mrf.mxu0
    %v984 = vadd.f32 %v880, %v983
    %v985 = vpop.f32.mrf.mxu0
    %986 = vmatprep.mubr.f32.mxu0 0.0
    %987 = vmatmul.mubr.f32.gmra.mxu0 %v915
    %v988 = vpop.f32.mrf.mxu0
    %v989 = vadd.f32 %v885, %v988
    %v990 = vpop.f32.mrf.mxu0
    %991 = vdwg.mxu0
    %v992 = vadd.f32 %v984, %v641
    %v993 = vadd.f32 %v989, %v641
    %v994 = vmax.f32 %v992, 0.0
    %v995 = vmax.f32 %v993, 0.0
    %v997 = vsel %vm474, %v994, 0
    %v1000 = vsel %vm474, %v995, 0
    %1002 = vmatprep.subr.mxu0 0.0
    %1003 = vmatpush1.msra.mxu0 0.0
    %1004 = vmatprep.subr.mxu0 0.0
    %1005 = vmatpush1.msra.mxu0 0.0
    %1006 = vmatprep.subr.mxu0 0.0
    %1007 = vmatpush1.msra.mxu0 0.0
    %1008 = vmatprep.subr.mxu0 0.0
    %1009 = vmatpush1.msra.mxu0 0.0
    %1010 = vmatprep.subr.mxu0 0.0
    %1011 = vmatpush1.msra.mxu0 0.0
    %1012 = vmatprep.subr.mxu0 0.0
    %1013 = vmatpush1.msra.mxu0 0.0
    %1014 = vmatprep.subr.mxu0 0.0
    %1015 = vmatpush1.msra.mxu0 0.0
    %1016 = vmatprep.subr.mxu0 0.0
    %1017 = vmatpush1.msra.mxu0 0.0
    %1018 = vmatprep.subr.mxu0 0.0
    %1019 = vmatpush1.msra.mxu0 0.0
    %1020 = vmatprep.subr.mxu0 0.0
    %1021 = vmatpush1.msra.mxu0 0.0
    %1022 = vmatprep.subr.mxu0 0.0
    %1023 = vmatpush1.msra.mxu0 0.0
    %1024 = vmatprep.subr.mxu0 0.0
    %1025 = vmatpush1.msra.mxu0 0.0
    %1026 = vmatprep.subr.mxu0 0.0
    %1027 = vmatpush1.msra.mxu0 %v472
    %1028 = vmatprep.subr.mxu0 0.0
    %1029 = vmatpush1.msra.mxu0 %v471
    %1030 = vmatprep.subr.mxu0 0.0
    %1031 = vmatpush1.msra.mxu0 %v470
    %1032 = vmatprep.subr.mxu0 0.0
    %1033 = vmatpush1.msra.mxu0 %v469
    %1034 = vmatprep.subr.mxu0 0.0
    %1035 = vmatpush2.msra.mxu0 0.0
    %1036 = vmatprep.subr.mxu0 0.0
    %1037 = vmatpush2.msra.mxu0 0.0
    %1038 = vmatprep.subr.mxu0 0.0
    %1039 = vmatpush2.msra.mxu0 0.0
    %1040 = vmatprep.subr.mxu0 0.0
    %1041 = vmatpush2.msra.mxu0 0.0
    %1042 = vmatprep.subr.mxu0 0.0
    %1043 = vmatpush2.msra.mxu0 0.0
    %1044 = vmatprep.subr.mxu0 0.0
    %1045 = vmatpush2.msra.mxu0 0.0
    %1046 = vmatprep.subr.mxu0 0.0
    %1047 = vmatpush2.msra.mxu0 0.0
    %1048 = vmatprep.subr.mxu0 0.0
    %1049 = vmatpush2.msra.mxu0 0.0
    %1050 = vmatprep.subr.mxu0 0.0
    %1051 = vmatpush2.msra.mxu0 0.0
    %1052 = vmatprep.subr.mxu0 0.0
    %1053 = vmatpush2.msra.mxu0 0.0
    %1054 = vmatprep.subr.mxu0 0.0
    %1055 = vmatpush2.msra.mxu0 0.0
    %1056 = vmatprep.subr.mxu0 0.0
    %1057 = vmatpush2.msra.mxu0 0.0
    %1058 = vmatprep.subr.mxu0 0.0
    %1059 = vmatpush2.msra.mxu0 0.0
    %1060 = vmatprep.subr.mxu0 0.0
    %1061 = vmatpush2.msra.mxu0 0.0
    %1062 = vmatprep.subr.mxu0 0.0
    %1063 = vmatpush2.msra.mxu0 0.0
    %1064 = vmatprep.subr.mxu0 0.0
    %1065 = vmatpush2.msra.mxu0 0.0
    %1066 = vmatprep.mubr.f32.mxu0 0.0
    %1067 = vmatmul.mubr.f32.gmra.mxu0 %v997
    %v1068 = vpop.f32.mrf.mxu0
    %v1069 = vadd.f32 %v651, %v1068
    %v1070 = vpop.f32.mrf.mxu0
    %1071 = vmatprep.mubr.f32.mxu0 0.0
    %1072 = vmatmul.mubr.f32.gmra.mxu0 %v1000
    %v1073 = vpop.f32.mrf.mxu0
    %v1074 = vadd.f32 %v651, %v1073
    %v1075 = vpop.f32.mrf.mxu0
    %1076 = vdwg.mxu0
    %v1077 = vmax.f32 %v1069, 0.0
    %v1078 = vmax.f32 %v1074, 0.0
    %v1081 = vcombine.high %v1077, %v1077
    %v1083 = vunpack.c.l.s4 1983009808
    %v1084 = vunpack.c.0.s8 %v1083
    %v1085 = vlaneseq
    %v1086 = vshrl.u32 %v1085, 7
    %v1087 = vsub.s32 %v1084, %v1086
    %v1088 = vrot.slane %v1077, %v1087
    %v1090 = vunpack.c.l.s4 1983009808
    %v1091 = vunpack.c.0.s8 %v1090
    %v1092 = vlaneseq
    %v1093 = vshrl.u32 %v1092, 7
    %v1094 = vsub.s32 %v1091, %v1093
    %v1095 = vrot.slane %v1081, %v1094
    %v1096 = vcombine.high %v1088, %v1088
    %v1097 = vcombine.high %v1095, %v1095
    %v1099 = vunpack.c.l.s4 1983009808
    %v1100 = vunpack.c.0.s8 %v1099
    %v1101 = vlaneseq
    %v1102 = vshrl.u32 %v1101, 7
    %v1103 = vsub.s32 %v1100, %v1102
    %v1104 = vrot.slane %v1078, %v1103
    %v1105 = vcombine.high %v1104, %v1104
    %v1106 = vcombine.low %v1088, %v1096
    %v1108 = vunpack.c.l.s4 1983009808
    %v1109 = vunpack.c.0.s8 %v1108
    %v1110 = vlaneseq
    %v1111 = vshrl.u32 %v1110, 7
    %v1112 = vsub.s32 %v1109, %v1111
    %v1113 = vrot.slane %v1106, %v1112
    %v1115 = vunpack.c.l.s4 1983009808
    %v1116 = vunpack.c.0.s8 %v1115
    %v1117 = vlaneseq
    %v1118 = vshrl.u32 %v1117, 7
    %v1119 = vsub.s32 %v1116, %v1118
    %v1120 = vrot.slane %v1095, %v1119
    %v1121 = vcombine.low %v1113, %v1120
    %v1122 = vcombine.low %v1097, %v1104
    %v1124 = vunpack.c.l.s4 1983009808
    %v1125 = vunpack.c.0.s8 %v1124
    %v1126 = vlaneseq
    %v1127 = vshrl.u32 %v1126, 7
    %v1128 = vsub.s32 %v1125, %v1127
    %v1129 = vrot.slane %v1122, %v1128
    %v1131 = vunpack.c.l.s4 1983009808
    %v1132 = vunpack.c.0.s8 %v1131
    %v1133 = vlaneseq
    %v1134 = vshrl.u32 %v1133, 7
    %v1135 = vsub.s32 %v1132, %v1134
    %v1136 = vrot.slane %v1105, %v1135
    %v1137 = vcombine.low %v1129, %v1136
    %vm1140 = vcmask 259072
    %v1141 = vsel %vm1140, %v1121, 0.0
    %v1142 = vrot.slane %v1141, 4
    %v1143 = vadd.f32 %v1141, %v1142
    %v1144 = vrot.slane %v1143, 2
    %v1145 = vadd.f32 %v1143, %v1144
    %v1146 = vrot.slane %v1145, 1
    %v1147 = vadd.f32 %v1145, %v1146
    %v1148 = vsel %vm1140, %v1137, 0.0
    %v1149 = vrot.slane %v1148, 4
    %v1150 = vadd.f32 %v1148, %v1149
    %v1151 = vrot.slane %v1150, 2
    %v1152 = vadd.f32 %v1150, %v1151
    %v1153 = vrot.slane %v1152, 1
    %v1154 = vadd.f32 %v1152, %v1153
    %v1155 = vld [vmem:[#allocation10] sm:$0xff]
    %v1156 = vld [vmem:[#allocation10 + $0x8] sm:$0xff]
    %v1157 = vld [vmem:[#allocation10 + $0x10] sm:$0xff]
    %v1158 = vld [vmem:[#allocation10 + $0x18] sm:$0xff]
    %s1159 = scalar_lea.vmem [#allocation10], 32
    %v1160 = vld [vmem:[%s1159] sm:$0xff]
    %v1161 = vld [vmem:[%s1159 + $0x8] sm:$0xff]
    %v1162 = vld [vmem:[%s1159 + $0x10] sm:$0xff]
    %v1163 = vld [vmem:[%s1159 + $0x18] sm:$0xff]
    %vm1166 = vcmask 1041409
    %v1167 = vsel %vm1166, %v1154, %v1147
    %v1168 = vsel %vm474, %v1167, 0
    %1170 = vmatprep.subr.mxu0 0.0
    %1171 = vmatpush1.msra.mxu0 0.0
    %1172 = vmatprep.subr.mxu0 0.0
    %1173 = vmatpush1.msra.mxu0 0.0
    %1174 = vmatprep.subr.mxu0 0.0
    %1175 = vmatpush1.msra.mxu0 0.0
    %1176 = vmatprep.subr.mxu0 0.0
    %1177 = vmatpush1.msra.mxu0 0.0
    %1178 = vmatprep.subr.mxu0 0.0
    %1179 = vmatpush1.msra.mxu0 0.0
    %1180 = vmatprep.subr.mxu0 0.0
    %1181 = vmatpush1.msra.mxu0 0.0
    %1182 = vmatprep.subr.mxu0 0.0
    %1183 = vmatpush1.msra.mxu0 0.0
    %1184 = vmatprep.subr.mxu0 0.0
    %1185 = vmatpush1.msra.mxu0 0.0
    %1186 = vmatprep.subr.mxu0 0.0
    %1187 = vmatpush1.msra.mxu0 0.0
    %1188 = vmatprep.subr.mxu0 0.0
    %1189 = vmatpush1.msra.mxu0 0.0
    %1190 = vmatprep.subr.mxu0 0.0
    %1191 = vmatpush1.msra.mxu0 0.0
    %1192 = vmatprep.subr.mxu0 0.0
    %1193 = vmatpush1.msra.mxu0 0.0
    %1194 = vmatprep.subr.mxu0 0.0
    %1195 = vmatpush1.msra.mxu0 %v1163
    %1196 = vmatprep.subr.mxu0 0.0
    %1197 = vmatpush1.msra.mxu0 %v1162
    %1198 = vmatprep.subr.mxu0 0.0
    %1199 = vmatpush1.msra.mxu0 %v1161
    %1200 = vmatprep.subr.mxu0 0.0
    %1201 = vmatpush1.msra.mxu0 %v1160
    %1202 = vmatprep.subr.mxu0 0.0
    %1203 = vmatpush2.msra.mxu0 0.0
    %1204 = vmatprep.subr.mxu0 0.0
    %1205 = vmatpush2.msra.mxu0 0.0
    %1206 = vmatprep.subr.mxu0 0.0
    %1207 = vmatpush2.msra.mxu0 0.0
    %1208 = vmatprep.subr.mxu0 0.0
    %1209 = vmatpush2.msra.mxu0 0.0
    %1210 = vmatprep.subr.mxu0 0.0
    %1211 = vmatpush2.msra.mxu0 0.0
    %1212 = vmatprep.subr.mxu0 0.0
    %1213 = vmatpush2.msra.mxu0 0.0
    %1214 = vmatprep.subr.mxu0 0.0
    %1215 = vmatpush2.msra.mxu0 0.0
    %1216 = vmatprep.subr.mxu0 0.0
    %1217 = vmatpush2.msra.mxu0 0.0
    %1218 = vmatprep.subr.mxu0 0.0
    %1219 = vmatpush2.msra.mxu0 0.0
    %1220 = vmatprep.subr.mxu0 0.0
    %1221 = vmatpush2.msra.mxu0 0.0
    %1222 = vmatprep.subr.mxu0 0.0
    %1223 = vmatpush2.msra.mxu0 0.0
    %1224 = vmatprep.subr.mxu0 0.0
    %1225 = vmatpush2.msra.mxu0 0.0
    %1226 = vmatprep.subr.mxu0 0.0
    %1227 = vmatpush2.msra.mxu0 0.0
    %1228 = vmatprep.subr.mxu0 0.0
    %1229 = vmatpush2.msra.mxu0 0.0
    %1230 = vmatprep.subr.mxu0 0.0
    %1231 = vmatpush2.msra.mxu0 0.0
    %1232 = vmatprep.subr.mxu0 0.0
    %1233 = vmatpush2.msra.mxu0 0.0
    %1234 = vmatprep.mubr.f32.mxu0 0.0
    %1235 = vmatmul.mubr.f32.gmra.mxu0 %v1168
    %v1236 = vpop.f32.mrf.mxu0
    %v1237 = vadd.f32 0.0, %v1236
    %v1238 = vpop.f32.mrf.mxu0
    %1239 = vdwg.mxu0
    %v1242 = vsel %vm1166, %v749, %v742
    %v1243 = vsel %vm474, %v1242, 0
    %1245 = vmatprep.subr.mxu0 0.0
    %1246 = vmatpush1.msra.mxu0 0.0
    %1247 = vmatprep.subr.mxu0 0.0
    %1248 = vmatpush1.msra.mxu0 0.0
    %1249 = vmatprep.subr.mxu0 0.0
    %1250 = vmatpush1.msra.mxu0 0.0
    %1251 = vmatprep.subr.mxu0 0.0
    %1252 = vmatpush1.msra.mxu0 0.0
    %1253 = vmatprep.subr.mxu0 0.0
    %1254 = vmatpush1.msra.mxu0 0.0
    %1255 = vmatprep.subr.mxu0 0.0
    %1256 = vmatpush1.msra.mxu0 0.0
    %1257 = vmatprep.subr.mxu0 0.0
    %1258 = vmatpush1.msra.mxu0 0.0
    %1259 = vmatprep.subr.mxu0 0.0
    %1260 = vmatpush1.msra.mxu0 0.0
    %1261 = vmatprep.subr.mxu0 0.0
    %1262 = vmatpush1.msra.mxu0 0.0
    %1263 = vmatprep.subr.mxu0 0.0
    %1264 = vmatpush1.msra.mxu0 0.0
    %1265 = vmatprep.subr.mxu0 0.0
    %1266 = vmatpush1.msra.mxu0 0.0
    %1267 = vmatprep.subr.mxu0 0.0
    %1268 = vmatpush1.msra.mxu0 0.0
    %1269 = vmatprep.subr.mxu0 0.0
    %1270 = vmatpush1.msra.mxu0 %v1158
    %1271 = vmatprep.subr.mxu0 0.0
    %1272 = vmatpush1.msra.mxu0 %v1157
    %1273 = vmatprep.subr.mxu0 0.0
    %1274 = vmatpush1.msra.mxu0 %v1156
    %1275 = vmatprep.subr.mxu0 0.0
    %1276 = vmatpush1.msra.mxu0 %v1155
    %1277 = vmatprep.subr.mxu0 0.0
    %1278 = vmatpush2.msra.mxu0 0.0
    %1279 = vmatprep.subr.mxu0 0.0
    %1280 = vmatpush2.msra.mxu0 0.0
    %1281 = vmatprep.subr.mxu0 0.0
    %1282 = vmatpush2.msra.mxu0 0.0
    %1283 = vmatprep.subr.mxu0 0.0
    %1284 = vmatpush2.msra.mxu0 0.0
    %1285 = vmatprep.subr.mxu0 0.0
    %1286 = vmatpush2.msra.mxu0 0.0
    %1287 = vmatprep.subr.mxu0 0.0
    %1288 = vmatpush2.msra.mxu0 0.0
    %1289 = vmatprep.subr.mxu0 0.0
    %1290 = vmatpush2.msra.mxu0 0.0
    %1291 = vmatprep.subr.mxu0 0.0
    %1292 = vmatpush2.msra.mxu0 0.0
    %1293 = vmatprep.subr.mxu0 0.0
    %1294 = vmatpush2.msra.mxu0 0.0
    %1295 = vmatprep.subr.mxu0 0.0
    %1296 = vmatpush2.msra.mxu0 0.0
    %1297 = vmatprep.subr.mxu0 0.0
    %1298 = vmatpush2.msra.mxu0 0.0
    %1299 = vmatprep.subr.mxu0 0.0
    %1300 = vmatpush2.msra.mxu0 0.0
    %1301 = vmatprep.subr.mxu0 0.0
    %1302 = vmatpush2.msra.mxu0 0.0
    %1303 = vmatprep.subr.mxu0 0.0
    %1304 = vmatpush2.msra.mxu0 0.0
    %1305 = vmatprep.subr.mxu0 0.0
    %1306 = vmatpush2.msra.mxu0 0.0
    %1307 = vmatprep.subr.mxu0 0.0
    %1308 = vmatpush2.msra.mxu0 0.0
    %1309 = vmatprep.mubr.f32.mxu0 0.0
    %1310 = vmatmul.mubr.f32.gmra.mxu0 %v1243
    %v1311 = vpop.f32.mrf.mxu0
    %v1312 = vadd.f32 %v1237, %v1311
    %v1313 = vpop.f32.mrf.mxu0
    %1314 = vdwg.mxu0
    %1315 = vrot.lane.b32.xlu0 %v123, 122
    %v1316 = vpop.permute.xlu0 %1315
    %v1317 = vsel %vm161, %v1316, 0
    %1319 = vmatprep.subr.mxu0 0.0
    %1320 = vmatpush1.msra.mxu0 0.0
    %1321 = vmatprep.subr.mxu0 0.0
    %1322 = vmatpush1.msra.mxu0 0.0
    %1323 = vmatprep.subr.mxu0 0.0
    %1324 = vmatpush1.msra.mxu0 0.0
    %1325 = vmatprep.subr.mxu0 0.0
    %1326 = vmatpush1.msra.mxu0 0.0
    %1327 = vmatprep.subr.mxu0 0.0
    %1328 = vmatpush1.msra.mxu0 0.0
    %1329 = vmatprep.subr.mxu0 0.0
    %1330 = vmatpush1.msra.mxu0 0.0
    %1331 = vmatprep.subr.mxu0 0.0
    %1332 = vmatpush1.msra.mxu0 0.0
    %1333 = vmatprep.subr.mxu0 0.0
    %1334 = vmatpush1.msra.mxu0 0.0
    %1335 = vmatprep.subr.mxu0 0.0
    %1336 = vmatpush1.msra.mxu0 0.0
    %1337 = vmatprep.subr.mxu0 0.0
    %1338 = vmatpush1.msra.mxu0 0.0
    %1339 = vmatprep.subr.mxu0 0.0
    %1340 = vmatpush1.msra.mxu0 0.0
    %1341 = vmatprep.subr.mxu0 0.0
    %1342 = vmatpush1.msra.mxu0 0.0
    %1343 = vmatprep.subr.mxu0 0.0
    %1344 = vmatpush1.msra.mxu0 0.0
    %1345 = vmatprep.subr.mxu0 0.0
    %1346 = vmatpush1.msra.mxu0 0.0
    %1347 = vmatprep.subr.mxu0 0.0
    %1348 = vmatpush1.msra.mxu0 0.0
    %1349 = vmatprep.subr.mxu0 0.0
    %1350 = vmatpush1.msra.mxu0 %v166
    %1351 = vmatprep.subr.mxu0 0.0
    %1352 = vmatpush2.msra.mxu0 0.0
    %1353 = vmatprep.subr.mxu0 0.0
    %1354 = vmatpush2.msra.mxu0 0.0
    %1355 = vmatprep.subr.mxu0 0.0
    %1356 = vmatpush2.msra.mxu0 0.0
    %1357 = vmatprep.subr.mxu0 0.0
    %1358 = vmatpush2.msra.mxu0 0.0
    %1359 = vmatprep.subr.mxu0 0.0
    %1360 = vmatpush2.msra.mxu0 0.0
    %1361 = vmatprep.subr.mxu0 0.0
    %1362 = vmatpush2.msra.mxu0 0.0
    %1363 = vmatprep.subr.mxu0 0.0
    %1364 = vmatpush2.msra.mxu0 0.0
    %1365 = vmatprep.subr.mxu0 0.0
    %1366 = vmatpush2.msra.mxu0 0.0
    %1367 = vmatprep.subr.mxu0 0.0
    %1368 = vmatpush2.msra.mxu0 0.0
    %1369 = vmatprep.subr.mxu0 0.0
    %1370 = vmatpush2.msra.mxu0 0.0
    %1371 = vmatprep.subr.mxu0 0.0
    %1372 = vmatpush2.msra.mxu0 0.0
    %1373 = vmatprep.subr.mxu0 0.0
    %1374 = vmatpush2.msra.mxu0 0.0
    %1375 = vmatprep.subr.mxu0 0.0
    %1376 = vmatpush2.msra.mxu0 0.0
    %1377 = vmatprep.subr.mxu0 0.0
    %1378 = vmatpush2.msra.mxu0 0.0
    %1379 = vmatprep.subr.mxu0 0.0
    %1380 = vmatpush2.msra.mxu0 0.0
    %1381 = vmatprep.subr.mxu0 0.0
    %1382 = vmatpush2.msra.mxu0 0.0
    %1383 = vmatprep.mubr.f32.mxu0 0.0
    %1384 = vmatmul.mubr.f32.gmra.mxu0 %v1317
    %v1385 = vpop.f32.mrf.mxu0
    %v1386 = vadd.f32 0.0, %v1385
    %v1387 = vpop.f32.mrf.mxu0
    %1388 = vdwg.mxu0
    %1389 = vrot.lane.b32.xlu0 %v124, 122
    %v1390 = vpop.permute.xlu0 %1389
    %v1391 = vsel %vm161, %v1390, 0
    %1393 = vmatprep.subr.mxu0 0.0
    %1394 = vmatpush1.msra.mxu0 0.0
    %1395 = vmatprep.subr.mxu0 0.0
    %1396 = vmatpush1.msra.mxu0 0.0
    %1397 = vmatprep.subr.mxu0 0.0
    %1398 = vmatpush1.msra.mxu0 0.0
    %1399 = vmatprep.subr.mxu0 0.0
    %1400 = vmatpush1.msra.mxu0 0.0
    %1401 = vmatprep.subr.mxu0 0.0
    %1402 = vmatpush1.msra.mxu0 0.0
    %1403 = vmatprep.subr.mxu0 0.0
    %1404 = vmatpush1.msra.mxu0 0.0
    %1405 = vmatprep.subr.mxu0 0.0
    %1406 = vmatpush1.msra.mxu0 0.0
    %1407 = vmatprep.subr.mxu0 0.0
    %1408 = vmatpush1.msra.mxu0 0.0
    %1409 = vmatprep.subr.mxu0 0.0
    %1410 = vmatpush1.msra.mxu0 0.0
    %1411 = vmatprep.subr.mxu0 0.0
    %1412 = vmatpush1.msra.mxu0 0.0
    %1413 = vmatprep.subr.mxu0 0.0
    %1414 = vmatpush1.msra.mxu0 0.0
    %1415 = vmatprep.subr.mxu0 0.0
    %1416 = vmatpush1.msra.mxu0 0.0
    %1417 = vmatprep.subr.mxu0 0.0
    %1418 = vmatpush1.msra.mxu0 0.0
    %1419 = vmatprep.subr.mxu0 0.0
    %1420 = vmatpush1.msra.mxu0 0.0
    %1421 = vmatprep.subr.mxu0 0.0
    %1422 = vmatpush1.msra.mxu0 0.0
    %1423 = vmatprep.subr.mxu0 0.0
    %1424 = vmatpush1.msra.mxu0 %v241
    %1425 = vmatprep.subr.mxu0 0.0
    %1426 = vmatpush2.msra.mxu0 0.0
    %1427 = vmatprep.subr.mxu0 0.0
    %1428 = vmatpush2.msra.mxu0 0.0
    %1429 = vmatprep.subr.mxu0 0.0
    %1430 = vmatpush2.msra.mxu0 0.0
    %1431 = vmatprep.subr.mxu0 0.0
    %1432 = vmatpush2.msra.mxu0 0.0
    %1433 = vmatprep.subr.mxu0 0.0
    %1434 = vmatpush2.msra.mxu0 0.0
    %1435 = vmatprep.subr.mxu0 0.0
    %1436 = vmatpush2.msra.mxu0 0.0
    %1437 = vmatprep.subr.mxu0 0.0
    %1438 = vmatpush2.msra.mxu0 0.0
    %1439 = vmatprep.subr.mxu0 0.0
    %1440 = vmatpush2.msra.mxu0 0.0
    %1441 = vmatprep.subr.mxu0 0.0
    %1442 = vmatpush2.msra.mxu0 0.0
    %1443 = vmatprep.subr.mxu0 0.0
    %1444 = vmatpush2.msra.mxu0 0.0
    %1445 = vmatprep.subr.mxu0 0.0
    %1446 = vmatpush2.msra.mxu0 0.0
    %1447 = vmatprep.subr.mxu0 0.0
    %1448 = vmatpush2.msra.mxu0 0.0
    %1449 = vmatprep.subr.mxu0 0.0
    %1450 = vmatpush2.msra.mxu0 0.0
    %1451 = vmatprep.subr.mxu0 0.0
    %1452 = vmatpush2.msra.mxu0 0.0
    %1453 = vmatprep.subr.mxu0 0.0
    %1454 = vmatpush2.msra.mxu0 0.0
    %1455 = vmatprep.subr.mxu0 0.0
    %1456 = vmatpush2.msra.mxu0 0.0
    %1457 = vmatprep.mubr.f32.mxu0 0.0
    %1458 = vmatmul.mubr.f32.gmra.mxu0 %v1391
    %v1459 = vpop.f32.mrf.mxu0
    %v1460 = vadd.f32 0.0, %v1459
    %v1461 = vpop.f32.mrf.mxu0
    %1462 = vdwg.mxu0
    %1463 = vrot.lane.b32.xlu0 %v125, 120
    %v1464 = vpop.permute.xlu0 %1463
    %v1465 = vsel %vm313, %v1464, 0
    %1467 = vmatprep.subr.mxu0 0.0
    %1468 = vmatpush1.msra.mxu0 0.0
    %1469 = vmatprep.subr.mxu0 0.0
    %1470 = vmatpush1.msra.mxu0 0.0
    %1471 = vmatprep.subr.mxu0 0.0
    %1472 = vmatpush1.msra.mxu0 0.0
    %1473 = vmatprep.subr.mxu0 0.0
    %1474 = vmatpush1.msra.mxu0 0.0
    %1475 = vmatprep.subr.mxu0 0.0
    %1476 = vmatpush1.msra.mxu0 0.0
    %1477 = vmatprep.subr.mxu0 0.0
    %1478 = vmatpush1.msra.mxu0 0.0
    %1479 = vmatprep.subr.mxu0 0.0
    %1480 = vmatpush1.msra.mxu0 0.0
    %1481 = vmatprep.subr.mxu0 0.0
    %1482 = vmatpush1.msra.mxu0 0.0
    %1483 = vmatprep.subr.mxu0 0.0
    %1484 = vmatpush1.msra.mxu0 0.0
    %1485 = vmatprep.subr.mxu0 0.0
    %1486 = vmatpush1.msra.mxu0 0.0
    %1487 = vmatprep.subr.mxu0 0.0
    %1488 = vmatpush1.msra.mxu0 0.0
    %1489 = vmatprep.subr.mxu0 0.0
    %1490 = vmatpush1.msra.mxu0 0.0
    %1491 = vmatprep.subr.mxu0 0.0
    %1492 = vmatpush1.msra.mxu0 0.0
    %1493 = vmatprep.subr.mxu0 0.0
    %1494 = vmatpush1.msra.mxu0 0.0
    %1495 = vmatprep.subr.mxu0 0.0
    %1496 = vmatpush1.msra.mxu0 0.0
    %1497 = vmatprep.subr.mxu0 0.0
    %1498 = vmatpush1.msra.mxu0 %v119
    %1499 = vmatprep.subr.mxu0 0.0
    %1500 = vmatpush2.msra.mxu0 0.0
    %1501 = vmatprep.subr.mxu0 0.0
    %1502 = vmatpush2.msra.mxu0 0.0
    %1503 = vmatprep.subr.mxu0 0.0
    %1504 = vmatpush2.msra.mxu0 0.0
    %1505 = vmatprep.subr.mxu0 0.0
    %1506 = vmatpush2.msra.mxu0 0.0
    %1507 = vmatprep.subr.mxu0 0.0
    %1508 = vmatpush2.msra.mxu0 0.0
    %1509 = vmatprep.subr.mxu0 0.0
    %1510 = vmatpush2.msra.mxu0 0.0
    %1511 = vmatprep.subr.mxu0 0.0
    %1512 = vmatpush2.msra.mxu0 0.0
    %1513 = vmatprep.subr.mxu0 0.0
    %1514 = vmatpush2.msra.mxu0 0.0
    %1515 = vmatprep.subr.mxu0 0.0
    %1516 = vmatpush2.msra.mxu0 0.0
    %1517 = vmatprep.subr.mxu0 0.0
    %1518 = vmatpush2.msra.mxu0 0.0
    %1519 = vmatprep.subr.mxu0 0.0
    %1520 = vmatpush2.msra.mxu0 0.0
    %1521 = vmatprep.subr.mxu0 0.0
    %1522 = vmatpush2.msra.mxu0 0.0
    %1523 = vmatprep.subr.mxu0 0.0
    %1524 = vmatpush2.msra.mxu0 0.0
    %1525 = vmatprep.subr.mxu0 0.0
    %1526 = vmatpush2.msra.mxu0 0.0
    %1527 = vmatprep.subr.mxu0 0.0
    %1528 = vmatpush2.msra.mxu0 0.0
    %1529 = vmatprep.subr.mxu0 0.0
    %1530 = vmatpush2.msra.mxu0 0.0
    %1531 = vmatprep.mubr.f32.mxu0 0.0
    %1532 = vmatmul.mubr.f32.gmra.mxu0 %v1465
    %v1533 = vpop.f32.mrf.mxu0
    %v1534 = vadd.f32 0.0, %v1533
    %v1535 = vpop.f32.mrf.mxu0
    %1536 = vdwg.mxu0
    %1537 = vrot.lane.b32.xlu0 %v126, 120
    %v1538 = vpop.permute.xlu0 %1537
    %v1539 = vsel %vm313, %v1538, 0
    %1541 = vmatprep.subr.mxu0 0.0
    %1542 = vmatpush1.msra.mxu0 0.0
    %1543 = vmatprep.subr.mxu0 0.0
    %1544 = vmatpush1.msra.mxu0 0.0
    %1545 = vmatprep.subr.mxu0 0.0
    %1546 = vmatpush1.msra.mxu0 0.0
    %1547 = vmatprep.subr.mxu0 0.0
    %1548 = vmatpush1.msra.mxu0 0.0
    %1549 = vmatprep.subr.mxu0 0.0
    %1550 = vmatpush1.msra.mxu0 0.0
    %1551 = vmatprep.subr.mxu0 0.0
    %1552 = vmatpush1.msra.mxu0 0.0
    %1553 = vmatprep.subr.mxu0 0.0
    %1554 = vmatpush1.msra.mxu0 0.0
    %1555 = vmatprep.subr.mxu0 0.0
    %1556 = vmatpush1.msra.mxu0 0.0
    %1557 = vmatprep.subr.mxu0 0.0
    %1558 = vmatpush1.msra.mxu0 0.0
    %1559 = vmatprep.subr.mxu0 0.0
    %1560 = vmatpush1.msra.mxu0 0.0
    %1561 = vmatprep.subr.mxu0 0.0
    %1562 = vmatpush1.msra.mxu0 0.0
    %1563 = vmatprep.subr.mxu0 0.0
    %1564 = vmatpush1.msra.mxu0 0.0
    %1565 = vmatprep.subr.mxu0 0.0
    %1566 = vmatpush1.msra.mxu0 0.0
    %1567 = vmatprep.subr.mxu0 0.0
    %1568 = vmatpush1.msra.mxu0 0.0
    %1569 = vmatprep.subr.mxu0 0.0
    %1570 = vmatpush1.msra.mxu0 0.0
    %1571 = vmatprep.subr.mxu0 0.0
    %1572 = vmatpush1.msra.mxu0 %v120
    %1573 = vmatprep.subr.mxu0 0.0
    %1574 = vmatpush2.msra.mxu0 0.0
    %1575 = vmatprep.subr.mxu0 0.0
    %1576 = vmatpush2.msra.mxu0 0.0
    %1577 = vmatprep.subr.mxu0 0.0
    %1578 = vmatpush2.msra.mxu0 0.0
    %1579 = vmatprep.subr.mxu0 0.0
    %1580 = vmatpush2.msra.mxu0 0.0
    %1581 = vmatprep.subr.mxu0 0.0
    %1582 = vmatpush2.msra.mxu0 0.0
    %1583 = vmatprep.subr.mxu0 0.0
    %1584 = vmatpush2.msra.mxu0 0.0
    %1585 = vmatprep.subr.mxu0 0.0
    %1586 = vmatpush2.msra.mxu0 0.0
    %1587 = vmatprep.subr.mxu0 0.0
    %1588 = vmatpush2.msra.mxu0 0.0
    %1589 = vmatprep.subr.mxu0 0.0
    %1590 = vmatpush2.msra.mxu0 0.0
    %1591 = vmatprep.subr.mxu0 0.0
    %1592 = vmatpush2.msra.mxu0 0.0
    %1593 = vmatprep.subr.mxu0 0.0
    %1594 = vmatpush2.msra.mxu0 0.0
    %1595 = vmatprep.subr.mxu0 0.0
    %1596 = vmatpush2.msra.mxu0 0.0
    %1597 = vmatprep.subr.mxu0 0.0
    %1598 = vmatpush2.msra.mxu0 0.0
    %1599 = vmatprep.subr.mxu0 0.0
    %1600 = vmatpush2.msra.mxu0 0.0
    %1601 = vmatprep.subr.mxu0 0.0
    %1602 = vmatpush2.msra.mxu0 0.0
    %1603 = vmatprep.subr.mxu0 0.0
    %1604 = vmatpush2.msra.mxu0 0.0
    %1605 = vmatprep.mubr.f32.mxu0 0.0
    %1606 = vmatmul.mubr.f32.gmra.mxu0 %v1539
    %v1607 = vpop.f32.mrf.mxu0
    %v1608 = vadd.f32 0.0, %v1607
    %v1609 = vpop.f32.mrf.mxu0
    %1610 = vdwg.mxu0
    %s1611 = scalar_lea.vmem %s4, 32
    %v1612 = vld [vmem:[%s1611] sm:$0xff]
    %v1613 = vld [vmem:[%s1611 + $0x8] sm:$0xff]
    %v1614 = vld [vmem:[%s1611 + $0x10] sm:$0xff]
    %v1615 = vld [vmem:[%s1611 + $0x18] sm:$0xff]
    %s1616 = scalar_lea.vmem [#allocation7], 32
    %v1617 = vld [vmem:[%s1616] sm:$0xff]
    %v1618 = vld [vmem:[%s1616 + $0x8] sm:$0xff]
    %v1619 = vld [vmem:[%s1616 + $0x10] sm:$0xff]
    %v1620 = vld [vmem:[%s1616 + $0x18] sm:$0xff]
    %s1621 = scalar_lea.vmem %s6, 1
    %v1622 = vld [vmem:[%s1621] sm:$0x1]
    %s1623 = scalar_lea.vmem [#allocation8], 32
    %v1624 = vld [vmem:[%s1623] sm:$0xff]
    %v1625 = vld [vmem:[%s1623 + $0x8] sm:$0xff]
    %v1626 = vld [vmem:[%s1623 + $0x10] sm:$0xff]
    %v1627 = vld [vmem:[%s1623 + $0x18] sm:$0xff]
    %s1628 = scalar_lea.vmem %s8, 1
    %v1629 = vld [vmem:[%s1628] sm:$0x1]
    %v1631 = vsel %vm474, %v1386, 0
    %v1634 = vsel %vm474, %v1460, 0
    %1636 = vmatprep.subr.mxu0 0.0
    %1637 = vmatpush1.msra.mxu0 0.0
    %1638 = vmatprep.subr.mxu0 0.0
    %1639 = vmatpush1.msra.mxu0 0.0
    %1640 = vmatprep.subr.mxu0 0.0
    %1641 = vmatpush1.msra.mxu0 0.0
    %1642 = vmatprep.subr.mxu0 0.0
    %1643 = vmatpush1.msra.mxu0 0.0
    %1644 = vmatprep.subr.mxu0 0.0
    %1645 = vmatpush1.msra.mxu0 0.0
    %1646 = vmatprep.subr.mxu0 0.0
    %1647 = vmatpush1.msra.mxu0 0.0
    %1648 = vmatprep.subr.mxu0 0.0
    %1649 = vmatpush1.msra.mxu0 0.0
    %1650 = vmatprep.subr.mxu0 0.0
    %1651 = vmatpush1.msra.mxu0 0.0
    %1652 = vmatprep.subr.mxu0 0.0
    %1653 = vmatpush1.msra.mxu0 0.0
    %1654 = vmatprep.subr.mxu0 0.0
    %1655 = vmatpush1.msra.mxu0 0.0
    %1656 = vmatprep.subr.mxu0 0.0
    %1657 = vmatpush1.msra.mxu0 0.0
    %1658 = vmatprep.subr.mxu0 0.0
    %1659 = vmatpush1.msra.mxu0 0.0
    %1660 = vmatprep.subr.mxu0 0.0
    %1661 = vmatpush1.msra.mxu0 %v1620
    %1662 = vmatprep.subr.mxu0 0.0
    %1663 = vmatpush1.msra.mxu0 %v1619
    %1664 = vmatprep.subr.mxu0 0.0
    %1665 = vmatpush1.msra.mxu0 %v1618
    %1666 = vmatprep.subr.mxu0 0.0
    %1667 = vmatpush1.msra.mxu0 %v1617
    %1668 = vmatprep.subr.mxu0 0.0
    %1669 = vmatpush2.msra.mxu0 0.0
    %1670 = vmatprep.subr.mxu0 0.0
    %1671 = vmatpush2.msra.mxu0 0.0
    %1672 = vmatprep.subr.mxu0 0.0
    %1673 = vmatpush2.msra.mxu0 0.0
    %1674 = vmatprep.subr.mxu0 0.0
    %1675 = vmatpush2.msra.mxu0 0.0
    %1676 = vmatprep.subr.mxu0 0.0
    %1677 = vmatpush2.msra.mxu0 0.0
    %1678 = vmatprep.subr.mxu0 0.0
    %1679 = vmatpush2.msra.mxu0 0.0
    %1680 = vmatprep.subr.mxu0 0.0
    %1681 = vmatpush2.msra.mxu0 0.0
    %1682 = vmatprep.subr.mxu0 0.0
    %1683 = vmatpush2.msra.mxu0 0.0
    %1684 = vmatprep.subr.mxu0 0.0
    %1685 = vmatpush2.msra.mxu0 0.0
    %1686 = vmatprep.subr.mxu0 0.0
    %1687 = vmatpush2.msra.mxu0 0.0
    %1688 = vmatprep.subr.mxu0 0.0
    %1689 = vmatpush2.msra.mxu0 0.0
    %1690 = vmatprep.subr.mxu0 0.0
    %1691 = vmatpush2.msra.mxu0 0.0
    %1692 = vmatprep.subr.mxu0 0.0
    %1693 = vmatpush2.msra.mxu0 0.0
    %1694 = vmatprep.subr.mxu0 0.0
    %1695 = vmatpush2.msra.mxu0 0.0
    %1696 = vmatprep.subr.mxu0 0.0
    %1697 = vmatpush2.msra.mxu0 0.0
    %1698 = vmatprep.subr.mxu0 0.0
    %1699 = vmatpush2.msra.mxu0 0.0
    %1700 = vmatprep.mubr.f32.mxu0 0.0
    %1701 = vmatmul.mubr.f32.gmra.mxu0 %v1631
    %v1702 = vpop.f32.mrf.mxu0
    %v1703 = vadd.f32 0.0, %v1702
    %v1704 = vpop.f32.mrf.mxu0
    %1705 = vmatprep.mubr.f32.mxu0 0.0
    %1706 = vmatmul.mubr.f32.gmra.mxu0 %v1634
    %v1707 = vpop.f32.mrf.mxu0
    %v1708 = vadd.f32 0.0, %v1707
    %v1709 = vpop.f32.mrf.mxu0
    %1710 = vdwg.mxu0
    %1711 = vmatprep.subr.mxu0 0.0
    %1712 = vmatpush1.msra.mxu0 0.0
    %1713 = vmatprep.subr.mxu0 0.0
    %1714 = vmatpush1.msra.mxu0 0.0
    %1715 = vmatprep.subr.mxu0 0.0
    %1716 = vmatpush1.msra.mxu0 0.0
    %1717 = vmatprep.subr.mxu0 0.0
    %1718 = vmatpush1.msra.mxu0 0.0
    %1719 = vmatprep.subr.mxu0 0.0
    %1720 = vmatpush1.msra.mxu0 0.0
    %1721 = vmatprep.subr.mxu0 0.0
    %1722 = vmatpush1.msra.mxu0 0.0
    %1723 = vmatprep.subr.mxu0 0.0
    %1724 = vmatpush1.msra.mxu0 0.0
    %1725 = vmatprep.subr.mxu0 0.0
    %1726 = vmatpush1.msra.mxu0 0.0
    %1727 = vmatprep.subr.mxu0 0.0
    %1728 = vmatpush1.msra.mxu0 0.0
    %1729 = vmatprep.subr.mxu0 0.0
    %1730 = vmatpush1.msra.mxu0 0.0
    %1731 = vmatprep.subr.mxu0 0.0
    %1732 = vmatpush1.msra.mxu0 0.0
    %1733 = vmatprep.subr.mxu0 0.0
    %1734 = vmatpush1.msra.mxu0 0.0
    %1735 = vmatprep.subr.mxu0 0.0
    %1736 = vmatpush1.msra.mxu0 %v1615
    %1737 = vmatprep.subr.mxu0 0.0
    %1738 = vmatpush1.msra.mxu0 %v1614
    %1739 = vmatprep.subr.mxu0 0.0
    %1740 = vmatpush1.msra.mxu0 %v1613
    %1741 = vmatprep.subr.mxu0 0.0
    %1742 = vmatpush1.msra.mxu0 %v1612
    %1743 = vmatprep.subr.mxu0 0.0
    %1744 = vmatpush2.msra.mxu0 0.0
    %1745 = vmatprep.subr.mxu0 0.0
    %1746 = vmatpush2.msra.mxu0 0.0
    %1747 = vmatprep.subr.mxu0 0.0
    %1748 = vmatpush2.msra.mxu0 0.0
    %1749 = vmatprep.subr.mxu0 0.0
    %1750 = vmatpush2.msra.mxu0 0.0
    %1751 = vmatprep.subr.mxu0 0.0
    %1752 = vmatpush2.msra.mxu0 0.0
    %1753 = vmatprep.subr.mxu0 0.0
    %1754 = vmatpush2.msra.mxu0 0.0
    %1755 = vmatprep.subr.mxu0 0.0
    %1756 = vmatpush2.msra.mxu0 0.0
    %1757 = vmatprep.subr.mxu0 0.0
    %1758 = vmatpush2.msra.mxu0 0.0
    %1759 = vmatprep.subr.mxu0 0.0
    %1760 = vmatpush2.msra.mxu0 0.0
    %1761 = vmatprep.subr.mxu0 0.0
    %1762 = vmatpush2.msra.mxu0 0.0
    %1763 = vmatprep.subr.mxu0 0.0
    %1764 = vmatpush2.msra.mxu0 0.0
    %1765 = vmatprep.subr.mxu0 0.0
    %1766 = vmatpush2.msra.mxu0 0.0
    %1767 = vmatprep.subr.mxu0 0.0
    %1768 = vmatpush2.msra.mxu0 0.0
    %1769 = vmatprep.subr.mxu0 0.0
    %1770 = vmatpush2.msra.mxu0 0.0
    %1771 = vmatprep.subr.mxu0 0.0
    %1772 = vmatpush2.msra.mxu0 0.0
    %1773 = vmatprep.subr.mxu0 0.0
    %1774 = vmatpush2.msra.mxu0 0.0
    %1775 = vmatprep.mubr.f32.mxu0 0.0
    %1776 = vmatmul.mubr.f32.gmra.mxu0 %v557
    %v1777 = vpop.f32.mrf.mxu0
    %v1778 = vadd.f32 %v1703, %v1777
    %v1779 = vpop.f32.mrf.mxu0
    %1780 = vmatprep.mubr.f32.mxu0 0.0
    %1781 = vmatmul.mubr.f32.gmra.mxu0 %v560
    %v1782 = vpop.f32.mrf.mxu0
    %v1783 = vadd.f32 %v1708, %v1782
    %v1784 = vpop.f32.mrf.mxu0
    %1785 = vdwg.mxu0
    %v1787 = vlaneseq
    %v1788 = vshrl.u32 %v1787, 7
    %v1789 = vsub.s32 0, %v1788
    %v1790 = vrot.slane %v1622, %v1789
    %v1792 = vadd.f32 %v1778, %v1790
    %v1793 = vadd.f32 %v1783, %v1790
    %v1794 = vmax.f32 %v1792, 0.0
    %v1795 = vmax.f32 %v1793, 0.0
    %v1797 = vlaneseq
    %v1798 = vshrl.u32 %v1797, 7
    %v1799 = vsub.s32 0, %v1798
    %v1800 = vrot.slane %v1629, %v1799
    %v1803 = vsel %vm474, %v1794, 0
    %v1806 = vsel %vm474, %v1795, 0
    %1808 = vmatprep.subr.mxu0 0.0
    %1809 = vmatpush1.msra.mxu0 0.0
    %1810 = vmatprep.subr.mxu0 0.0
    %1811 = vmatpush1.msra.mxu0 0.0
    %1812 = vmatprep.subr.mxu0 0.0
    %1813 = vmatpush1.msra.mxu0 0.0
    %1814 = vmatprep.subr.mxu0 0.0
    %1815 = vmatpush1.msra.mxu0 0.0
    %1816 = vmatprep.subr.mxu0 0.0
    %1817 = vmatpush1.msra.mxu0 0.0
    %1818 = vmatprep.subr.mxu0 0.0
    %1819 = vmatpush1.msra.mxu0 0.0
    %1820 = vmatprep.subr.mxu0 0.0
    %1821 = vmatpush1.msra.mxu0 0.0
    %1822 = vmatprep.subr.mxu0 0.0
    %1823 = vmatpush1.msra.mxu0 0.0
    %1824 = vmatprep.subr.mxu0 0.0
    %1825 = vmatpush1.msra.mxu0 0.0
    %1826 = vmatprep.subr.mxu0 0.0
    %1827 = vmatpush1.msra.mxu0 0.0
    %1828 = vmatprep.subr.mxu0 0.0
    %1829 = vmatpush1.msra.mxu0 0.0
    %1830 = vmatprep.subr.mxu0 0.0
    %1831 = vmatpush1.msra.mxu0 0.0
    %1832 = vmatprep.subr.mxu0 0.0
    %1833 = vmatpush1.msra.mxu0 %v1627
    %1834 = vmatprep.subr.mxu0 0.0
    %1835 = vmatpush1.msra.mxu0 %v1626
    %1836 = vmatprep.subr.mxu0 0.0
    %1837 = vmatpush1.msra.mxu0 %v1625
    %1838 = vmatprep.subr.mxu0 0.0
    %1839 = vmatpush1.msra.mxu0 %v1624
    %1840 = vmatprep.subr.mxu0 0.0
    %1841 = vmatpush2.msra.mxu0 0.0
    %1842 = vmatprep.subr.mxu0 0.0
    %1843 = vmatpush2.msra.mxu0 0.0
    %1844 = vmatprep.subr.mxu0 0.0
    %1845 = vmatpush2.msra.mxu0 0.0
    %1846 = vmatprep.subr.mxu0 0.0
    %1847 = vmatpush2.msra.mxu0 0.0
    %1848 = vmatprep.subr.mxu0 0.0
    %1849 = vmatpush2.msra.mxu0 0.0
    %1850 = vmatprep.subr.mxu0 0.0
    %1851 = vmatpush2.msra.mxu0 0.0
    %1852 = vmatprep.subr.mxu0 0.0
    %1853 = vmatpush2.msra.mxu0 0.0
    %1854 = vmatprep.subr.mxu0 0.0
    %1855 = vmatpush2.msra.mxu0 0.0
    %1856 = vmatprep.subr.mxu0 0.0
    %1857 = vmatpush2.msra.mxu0 0.0
    %1858 = vmatprep.subr.mxu0 0.0
    %1859 = vmatpush2.msra.mxu0 0.0
    %1860 = vmatprep.subr.mxu0 0.0
    %1861 = vmatpush2.msra.mxu0 0.0
    %1862 = vmatprep.subr.mxu0 0.0
    %1863 = vmatpush2.msra.mxu0 0.0
    %1864 = vmatprep.subr.mxu0 0.0
    %1865 = vmatpush2.msra.mxu0 0.0
    %1866 = vmatprep.subr.mxu0 0.0
    %1867 = vmatpush2.msra.mxu0 0.0
    %1868 = vmatprep.subr.mxu0 0.0
    %1869 = vmatpush2.msra.mxu0 0.0
    %1870 = vmatprep.subr.mxu0 0.0
    %1871 = vmatpush2.msra.mxu0 0.0
    %1872 = vmatprep.mubr.f32.mxu0 0.0
    %1873 = vmatmul.mubr.f32.gmra.mxu0 %v1803
    %v1874 = vpop.f32.mrf.mxu0
    %v1875 = vadd.f32 %v1800, %v1874
    %v1876 = vpop.f32.mrf.mxu0
    %1877 = vmatprep.mubr.f32.mxu0 0.0
    %1878 = vmatmul.mubr.f32.gmra.mxu0 %v1806
    %v1879 = vpop.f32.mrf.mxu0
    %v1880 = vadd.f32 %v1800, %v1879
    %v1881 = vpop.f32.mrf.mxu0
    %1882 = vdwg.mxu0
    %v1883 = vmax.f32 %v1875, 0.0
    %v1884 = vmax.f32 %v1880, 0.0
    %v1885 = vsel %vm474, %v1883, 0.0
    %v1886 = vrot.slane %v1885, 4
    %v1887 = vadd.f32 %v1885, %v1886
    %v1888 = vrot.slane %v1887, 2
    %v1889 = vadd.f32 %v1887, %v1888
    %v1890 = vrot.slane %v1889, 1
    %v1891 = vadd.f32 %v1889, %v1890
    %v1892 = vsel %vm474, %v1884, 0.0
    %v1893 = vrot.slane %v1892, 4
    %v1894 = vadd.f32 %v1892, %v1893
    %v1895 = vrot.slane %v1894, 2
    %v1896 = vadd.f32 %v1894, %v1895
    %v1897 = vrot.slane %v1896, 1
    %v1898 = vadd.f32 %v1896, %v1897
    %v1901 = vcombine.high %v1534, %v1534
    %v1903 = vunpack.c.l.s4 1983009808
    %v1904 = vunpack.c.0.s8 %v1903
    %v1905 = vlaneseq
    %v1906 = vshrl.u32 %v1905, 7
    %v1907 = vsub.s32 %v1904, %v1906
    %v1908 = vrot.slane %v1534, %v1907
    %v1910 = vunpack.c.l.s4 1983009808
    %v1911 = vunpack.c.0.s8 %v1910
    %v1912 = vlaneseq
    %v1913 = vshrl.u32 %v1912, 7
    %v1914 = vsub.s32 %v1911, %v1913
    %v1915 = vrot.slane %v1901, %v1914
    %v1916 = vcombine.high %v1908, %v1908
    %v1917 = vcombine.high %v1608, %v1608
    %v1919 = vunpack.c.l.s4 1983009808
    %v1920 = vunpack.c.0.s8 %v1919
    %v1921 = vlaneseq
    %v1922 = vshrl.u32 %v1921, 7
    %v1923 = vsub.s32 %v1920, %v1922
    %v1924 = vrot.slane %v1608, %v1923
    %v1926 = vunpack.c.l.s4 1983009808
    %v1927 = vunpack.c.0.s8 %v1926
    %v1928 = vlaneseq
    %v1929 = vshrl.u32 %v1928, 7
    %v1930 = vsub.s32 %v1927, %v1929
    %v1931 = vrot.slane %v1917, %v1930
    %v1932 = vcombine.high %v1924, %v1924
    %v1933 = vcombine.low %v1908, %v1916
    %v1934 = vcombine.low %v1915, %v1924
    %v1936 = vunpack.c.l.s4 1983009808
    %v1937 = vunpack.c.0.s8 %v1936
    %v1938 = vlaneseq
    %v1939 = vshrl.u32 %v1938, 7
    %v1940 = vsub.s32 %v1937, %v1939
    %v1941 = vrot.slane %v1933, %v1940
    %v1943 = vunpack.c.l.s4 1983009808
    %v1944 = vunpack.c.0.s8 %v1943
    %v1945 = vlaneseq
    %v1946 = vshrl.u32 %v1945, 7
    %v1947 = vsub.s32 %v1944, %v1946
    %v1948 = vrot.slane %v1934, %v1947
    %v1949 = vcombine.low %v1941, %v1948
    %v1950 = vcombine.low %v1932, %v1931
    %v1952 = vunpack.c.l.s4 1983009808
    %v1953 = vunpack.c.0.s8 %v1952
    %v1954 = vlaneseq
    %v1955 = vshrl.u32 %v1954, 7
    %v1956 = vsub.s32 %v1953, %v1955
    %v1957 = vrot.slane %v1950, %v1956
    %v1958 = vsel %vm474, %v1949, 0
    %v1960 = vsel %vm474, %v1957, 0
    %1962 = vmatprep.subr.mxu0 0.0
    %1963 = vmatpush1.msra.mxu0 0.0
    %1964 = vmatprep.subr.mxu0 0.0
    %1965 = vmatpush1.msra.mxu0 0.0
    %1966 = vmatprep.subr.mxu0 0.0
    %1967 = vmatpush1.msra.mxu0 0.0
    %1968 = vmatprep.subr.mxu0 0.0
    %1969 = vmatpush1.msra.mxu0 0.0
    %1970 = vmatprep.subr.mxu0 0.0
    %1971 = vmatpush1.msra.mxu0 0.0
    %1972 = vmatprep.subr.mxu0 0.0
    %1973 = vmatpush1.msra.mxu0 0.0
    %1974 = vmatprep.subr.mxu0 0.0
    %1975 = vmatpush1.msra.mxu0 0.0
    %1976 = vmatprep.subr.mxu0 0.0
    %1977 = vmatpush1.msra.mxu0 0.0
    %1978 = vmatprep.subr.mxu0 0.0
    %1979 = vmatpush1.msra.mxu0 0.0
    %1980 = vmatprep.subr.mxu0 0.0
    %1981 = vmatpush1.msra.mxu0 0.0
    %1982 = vmatprep.subr.mxu0 0.0
    %1983 = vmatpush1.msra.mxu0 0.0
    %1984 = vmatprep.subr.mxu0 0.0
    %1985 = vmatpush1.msra.mxu0 0.0
    %1986 = vmatprep.subr.mxu0 0.0
    %1987 = vmatpush1.msra.mxu0 %v1620
    %1988 = vmatprep.subr.mxu0 0.0
    %1989 = vmatpush1.msra.mxu0 %v1619
    %1990 = vmatprep.subr.mxu0 0.0
    %1991 = vmatpush1.msra.mxu0 %v1618
    %1992 = vmatprep.subr.mxu0 0.0
    %1993 = vmatpush1.msra.mxu0 %v1617
    %1994 = vmatprep.subr.mxu0 0.0
    %1995 = vmatpush2.msra.mxu0 0.0
    %1996 = vmatprep.subr.mxu0 0.0
    %1997 = vmatpush2.msra.mxu0 0.0
    %1998 = vmatprep.subr.mxu0 0.0
    %1999 = vmatpush2.msra.mxu0 0.0
    %2000 = vmatprep.subr.mxu0 0.0
    %2001 = vmatpush2.msra.mxu0 0.0
    %2002 = vmatprep.subr.mxu0 0.0
    %2003 = vmatpush2.msra.mxu0 0.0
    %2004 = vmatprep.subr.mxu0 0.0
    %2005 = vmatpush2.msra.mxu0 0.0
    %2006 = vmatprep.subr.mxu0 0.0
    %2007 = vmatpush2.msra.mxu0 0.0
    %2008 = vmatprep.subr.mxu0 0.0
    %2009 = vmatpush2.msra.mxu0 0.0
    %2010 = vmatprep.subr.mxu0 0.0
    %2011 = vmatpush2.msra.mxu0 0.0
    %2012 = vmatprep.subr.mxu0 0.0
    %2013 = vmatpush2.msra.mxu0 0.0
    %2014 = vmatprep.subr.mxu0 0.0
    %2015 = vmatpush2.msra.mxu0 0.0
    %2016 = vmatprep.subr.mxu0 0.0
    %2017 = vmatpush2.msra.mxu0 0.0
    %2018 = vmatprep.subr.mxu0 0.0
    %2019 = vmatpush2.msra.mxu0 0.0
    %2020 = vmatprep.subr.mxu0 0.0
    %2021 = vmatpush2.msra.mxu0 0.0
    %2022 = vmatprep.subr.mxu0 0.0
    %2023 = vmatpush2.msra.mxu0 0.0
    %2024 = vmatprep.subr.mxu0 0.0
    %2025 = vmatpush2.msra.mxu0 0.0
    %2026 = vmatprep.mubr.f32.mxu0 0.0
    %2027 = vmatmul.mubr.f32.gmra.mxu0 %v1958
    %v2028 = vpop.f32.mrf.mxu0
    %v2029 = vadd.f32 0.0, %v2028
    %v2030 = vpop.f32.mrf.mxu0
    %2031 = vmatprep.mubr.f32.mxu0 0.0
    %2032 = vmatmul.mubr.f32.gmra.mxu0 %v1960
    %v2033 = vpop.f32.mrf.mxu0
    %v2034 = vadd.f32 0.0, %v2033
    %v2035 = vpop.f32.mrf.mxu0
    %2036 = vdwg.mxu0
    %2037 = vmatprep.subr.mxu0 0.0
    %2038 = vmatpush1.msra.mxu0 0.0
    %2039 = vmatprep.subr.mxu0 0.0
    %2040 = vmatpush1.msra.mxu0 0.0
    %2041 = vmatprep.subr.mxu0 0.0
    %2042 = vmatpush1.msra.mxu0 0.0
    %2043 = vmatprep.subr.mxu0 0.0
    %2044 = vmatpush1.msra.mxu0 0.0
    %2045 = vmatprep.subr.mxu0 0.0
    %2046 = vmatpush1.msra.mxu0 0.0
    %2047 = vmatprep.subr.mxu0 0.0
    %2048 = vmatpush1.msra.mxu0 0.0
    %2049 = vmatprep.subr.mxu0 0.0
    %2050 = vmatpush1.msra.mxu0 0.0
    %2051 = vmatprep.subr.mxu0 0.0
    %2052 = vmatpush1.msra.mxu0 0.0
    %2053 = vmatprep.subr.mxu0 0.0
    %2054 = vmatpush1.msra.mxu0 0.0
    %2055 = vmatprep.subr.mxu0 0.0
    %2056 = vmatpush1.msra.mxu0 0.0
    %2057 = vmatprep.subr.mxu0 0.0
    %2058 = vmatpush1.msra.mxu0 0.0
    %2059 = vmatprep.subr.mxu0 0.0
    %2060 = vmatpush1.msra.mxu0 0.0
    %2061 = vmatprep.subr.mxu0 0.0
    %2062 = vmatpush1.msra.mxu0 %v1615
    %2063 = vmatprep.subr.mxu0 0.0
    %2064 = vmatpush1.msra.mxu0 %v1614
    %2065 = vmatprep.subr.mxu0 0.0
    %2066 = vmatpush1.msra.mxu0 %v1613
    %2067 = vmatprep.subr.mxu0 0.0
    %2068 = vmatpush1.msra.mxu0 %v1612
    %2069 = vmatprep.subr.mxu0 0.0
    %2070 = vmatpush2.msra.mxu0 0.0
    %2071 = vmatprep.subr.mxu0 0.0
    %2072 = vmatpush2.msra.mxu0 0.0
    %2073 = vmatprep.subr.mxu0 0.0
    %2074 = vmatpush2.msra.mxu0 0.0
    %2075 = vmatprep.subr.mxu0 0.0
    %2076 = vmatpush2.msra.mxu0 0.0
    %2077 = vmatprep.subr.mxu0 0.0
    %2078 = vmatpush2.msra.mxu0 0.0
    %2079 = vmatprep.subr.mxu0 0.0
    %2080 = vmatpush2.msra.mxu0 0.0
    %2081 = vmatprep.subr.mxu0 0.0
    %2082 = vmatpush2.msra.mxu0 0.0
    %2083 = vmatprep.subr.mxu0 0.0
    %2084 = vmatpush2.msra.mxu0 0.0
    %2085 = vmatprep.subr.mxu0 0.0
    %2086 = vmatpush2.msra.mxu0 0.0
    %2087 = vmatprep.subr.mxu0 0.0
    %2088 = vmatpush2.msra.mxu0 0.0
    %2089 = vmatprep.subr.mxu0 0.0
    %2090 = vmatpush2.msra.mxu0 0.0
    %2091 = vmatprep.subr.mxu0 0.0
    %2092 = vmatpush2.msra.mxu0 0.0
    %2093 = vmatprep.subr.mxu0 0.0
    %2094 = vmatpush2.msra.mxu0 0.0
    %2095 = vmatprep.subr.mxu0 0.0
    %2096 = vmatpush2.msra.mxu0 0.0
    %2097 = vmatprep.subr.mxu0 0.0
    %2098 = vmatpush2.msra.mxu0 0.0
    %2099 = vmatprep.subr.mxu0 0.0
    %2100 = vmatpush2.msra.mxu0 0.0
    %2101 = vmatprep.mubr.f32.mxu0 0.0
    %2102 = vmatmul.mubr.f32.gmra.mxu0 %v913
    %v2103 = vpop.f32.mrf.mxu0
    %v2104 = vadd.f32 %v2029, %v2103
    %v2105 = vpop.f32.mrf.mxu0
    %2106 = vmatprep.mubr.f32.mxu0 0.0
    %2107 = vmatmul.mubr.f32.gmra.mxu0 %v915
    %v2108 = vpop.f32.mrf.mxu0
    %v2109 = vadd.f32 %v2034, %v2108
    %v2110 = vpop.f32.mrf.mxu0
    %2111 = vdwg.mxu0
    %v2112 = vadd.f32 %v2104, %v1790
    %v2113 = vadd.f32 %v2109, %v1790
    %v2114 = vmax.f32 %v2112, 0.0
    %v2115 = vmax.f32 %v2113, 0.0
    %v2117 = vsel %vm474, %v2114, 0
    %v2120 = vsel %vm474, %v2115, 0
    %2122 = vmatprep.subr.mxu0 0.0
    %2123 = vmatpush1.msra.mxu0 0.0
    %2124 = vmatprep.subr.mxu0 0.0
    %2125 = vmatpush1.msra.mxu0 0.0
    %2126 = vmatprep.subr.mxu0 0.0
    %2127 = vmatpush1.msra.mxu0 0.0
    %2128 = vmatprep.subr.mxu0 0.0
    %2129 = vmatpush1.msra.mxu0 0.0
    %2130 = vmatprep.subr.mxu0 0.0
    %2131 = vmatpush1.msra.mxu0 0.0
    %2132 = vmatprep.subr.mxu0 0.0
    %2133 = vmatpush1.msra.mxu0 0.0
    %2134 = vmatprep.subr.mxu0 0.0
    %2135 = vmatpush1.msra.mxu0 0.0
    %2136 = vmatprep.subr.mxu0 0.0
    %2137 = vmatpush1.msra.mxu0 0.0
    %2138 = vmatprep.subr.mxu0 0.0
    %2139 = vmatpush1.msra.mxu0 0.0
    %2140 = vmatprep.subr.mxu0 0.0
    %2141 = vmatpush1.msra.mxu0 0.0
    %2142 = vmatprep.subr.mxu0 0.0
    %2143 = vmatpush1.msra.mxu0 0.0
    %2144 = vmatprep.subr.mxu0 0.0
    %2145 = vmatpush1.msra.mxu0 0.0
    %2146 = vmatprep.subr.mxu0 0.0
    %2147 = vmatpush1.msra.mxu0 %v1627
    %2148 = vmatprep.subr.mxu0 0.0
    %2149 = vmatpush1.msra.mxu0 %v1626
    %2150 = vmatprep.subr.mxu0 0.0
    %2151 = vmatpush1.msra.mxu0 %v1625
    %2152 = vmatprep.subr.mxu0 0.0
    %2153 = vmatpush1.msra.mxu0 %v1624
    %2154 = vmatprep.subr.mxu0 0.0
    %2155 = vmatpush2.msra.mxu0 0.0
    %2156 = vmatprep.subr.mxu0 0.0
    %2157 = vmatpush2.msra.mxu0 0.0
    %2158 = vmatprep.subr.mxu0 0.0
    %2159 = vmatpush2.msra.mxu0 0.0
    %2160 = vmatprep.subr.mxu0 0.0
    %2161 = vmatpush2.msra.mxu0 0.0
    %2162 = vmatprep.subr.mxu0 0.0
    %2163 = vmatpush2.msra.mxu0 0.0
    %2164 = vmatprep.subr.mxu0 0.0
    %2165 = vmatpush2.msra.mxu0 0.0
    %2166 = vmatprep.subr.mxu0 0.0
    %2167 = vmatpush2.msra.mxu0 0.0
    %2168 = vmatprep.subr.mxu0 0.0
    %2169 = vmatpush2.msra.mxu0 0.0
    %2170 = vmatprep.subr.mxu0 0.0
    %2171 = vmatpush2.msra.mxu0 0.0
    %2172 = vmatprep.subr.mxu0 0.0
    %2173 = vmatpush2.msra.mxu0 0.0
    %2174 = vmatprep.subr.mxu0 0.0
    %2175 = vmatpush2.msra.mxu0 0.0
    %2176 = vmatprep.subr.mxu0 0.0
    %2177 = vmatpush2.msra.mxu0 0.0
    %2178 = vmatprep.subr.mxu0 0.0
    %2179 = vmatpush2.msra.mxu0 0.0
    %2180 = vmatprep.subr.mxu0 0.0
    %2181 = vmatpush2.msra.mxu0 0.0
    %2182 = vmatprep.subr.mxu0 0.0
    %2183 = vmatpush2.msra.mxu0 0.0
    %2184 = vmatprep.subr.mxu0 0.0
    %2185 = vmatpush2.msra.mxu0 0.0
    %2186 = vmatprep.mubr.f32.mxu0 0.0
    %2187 = vmatmul.mubr.f32.gmra.mxu0 %v2117
    %v2188 = vpop.f32.mrf.mxu0
    %v2189 = vadd.f32 %v1800, %v2188
    %v2190 = vpop.f32.mrf.mxu0
    %2191 = vmatprep.mubr.f32.mxu0 0.0
    %2192 = vmatmul.mubr.f32.gmra.mxu0 %v2120
    %v2193 = vpop.f32.mrf.mxu0
    %v2194 = vadd.f32 %v1800, %v2193
    %v2195 = vpop.f32.mrf.mxu0
    %2196 = vdwg.mxu0
    %v2197 = vmax.f32 %v2189, 0.0
    %v2198 = vmax.f32 %v2194, 0.0
    %v2201 = vcombine.high %v2197, %v2197
    %v2203 = vunpack.c.l.s4 1983009808
    %v2204 = vunpack.c.0.s8 %v2203
    %v2205 = vlaneseq
    %v2206 = vshrl.u32 %v2205, 7
    %v2207 = vsub.s32 %v2204, %v2206
    %v2208 = vrot.slane %v2197, %v2207
    %v2210 = vunpack.c.l.s4 1983009808
    %v2211 = vunpack.c.0.s8 %v2210
    %v2212 = vlaneseq
    %v2213 = vshrl.u32 %v2212, 7
    %v2214 = vsub.s32 %v2211, %v2213
    %v2215 = vrot.slane %v2201, %v2214
    %v2216 = vcombine.high %v2208, %v2208
    %v2217 = vcombine.high %v2215, %v2215
    %v2219 = vunpack.c.l.s4 1983009808
    %v2220 = vunpack.c.0.s8 %v2219
    %v2221 = vlaneseq
    %v2222 = vshrl.u32 %v2221, 7
    %v2223 = vsub.s32 %v2220, %v2222
    %v2224 = vrot.slane %v2198, %v2223
    %v2225 = vcombine.high %v2224, %v2224
    %v2226 = vcombine.low %v2208, %v2216
    %v2228 = vunpack.c.l.s4 1983009808
    %v2229 = vunpack.c.0.s8 %v2228
    %v2230 = vlaneseq
    %v2231 = vshrl.u32 %v2230, 7
    %v2232 = vsub.s32 %v2229, %v2231
    %v2233 = vrot.slane %v2226, %v2232
    %v2235 = vunpack.c.l.s4 1983009808
    %v2236 = vunpack.c.0.s8 %v2235
    %v2237 = vlaneseq
    %v2238 = vshrl.u32 %v2237, 7
    %v2239 = vsub.s32 %v2236, %v2238
    %v2240 = vrot.slane %v2215, %v2239
    %v2241 = vcombine.low %v2233, %v2240
    %v2242 = vcombine.low %v2217, %v2224
    %v2244 = vunpack.c.l.s4 1983009808
    %v2245 = vunpack.c.0.s8 %v2244
    %v2246 = vlaneseq
    %v2247 = vshrl.u32 %v2246, 7
    %v2248 = vsub.s32 %v2245, %v2247
    %v2249 = vrot.slane %v2242, %v2248
    %v2251 = vunpack.c.l.s4 1983009808
    %v2252 = vunpack.c.0.s8 %v2251
    %v2253 = vlaneseq
    %v2254 = vshrl.u32 %v2253, 7
    %v2255 = vsub.s32 %v2252, %v2254
    %v2256 = vrot.slane %v2225, %v2255
    %v2257 = vcombine.low %v2249, %v2256
    %v2260 = vsel %vm1140, %v2241, 0.0
    %v2261 = vrot.slane %v2260, 4
    %v2262 = vadd.f32 %v2260, %v2261
    %v2263 = vrot.slane %v2262, 2
    %v2264 = vadd.f32 %v2262, %v2263
    %v2265 = vrot.slane %v2264, 1
    %v2266 = vadd.f32 %v2264, %v2265
    %v2267 = vsel %vm1140, %v2257, 0.0
    %v2268 = vrot.slane %v2267, 4
    %v2269 = vadd.f32 %v2267, %v2268
    %v2270 = vrot.slane %v2269, 2
    %v2271 = vadd.f32 %v2269, %v2270
    %v2272 = vrot.slane %v2271, 1
    %v2273 = vadd.f32 %v2271, %v2272
    %s2274 = scalar_lea.vmem [#allocation10], 64
    %v2275 = vld [vmem:[%s2274] sm:$0xff]
    %v2276 = vld [vmem:[%s2274 + $0x8] sm:$0xff]
    %v2277 = vld [vmem:[%s2274 + $0x10] sm:$0xff]
    %v2278 = vld [vmem:[%s2274 + $0x18] sm:$0xff]
    %v2281 = vsel %vm1166, %v1898, %v1891
    %v2282 = vsel %vm474, %v2281, 0
    %2284 = vmatprep.subr.mxu0 0.0
    %2285 = vmatpush1.msra.mxu0 0.0
    %2286 = vmatprep.subr.mxu0 0.0
    %2287 = vmatpush1.msra.mxu0 0.0
    %2288 = vmatprep.subr.mxu0 0.0
    %2289 = vmatpush1.msra.mxu0 0.0
    %2290 = vmatprep.subr.mxu0 0.0
    %2291 = vmatpush1.msra.mxu0 0.0
    %2292 = vmatprep.subr.mxu0 0.0
    %2293 = vmatpush1.msra.mxu0 0.0
    %2294 = vmatprep.subr.mxu0 0.0
    %2295 = vmatpush1.msra.mxu0 0.0
    %2296 = vmatprep.subr.mxu0 0.0
    %2297 = vmatpush1.msra.mxu0 0.0
    %2298 = vmatprep.subr.mxu0 0.0
    %2299 = vmatpush1.msra.mxu0 0.0
    %2300 = vmatprep.subr.mxu0 0.0
    %2301 = vmatpush1.msra.mxu0 0.0
    %2302 = vmatprep.subr.mxu0 0.0
    %2303 = vmatpush1.msra.mxu0 0.0
    %2304 = vmatprep.subr.mxu0 0.0
    %2305 = vmatpush1.msra.mxu0 0.0
    %2306 = vmatprep.subr.mxu0 0.0
    %2307 = vmatpush1.msra.mxu0 0.0
    %2308 = vmatprep.subr.mxu0 0.0
    %2309 = vmatpush1.msra.mxu0 %v2278
    %2310 = vmatprep.subr.mxu0 0.0
    %2311 = vmatpush1.msra.mxu0 %v2277
    %2312 = vmatprep.subr.mxu0 0.0
    %2313 = vmatpush1.msra.mxu0 %v2276
    %2314 = vmatprep.subr.mxu0 0.0
    %2315 = vmatpush1.msra.mxu0 %v2275
    %2316 = vmatprep.subr.mxu0 0.0
    %2317 = vmatpush2.msra.mxu0 0.0
    %2318 = vmatprep.subr.mxu0 0.0
    %2319 = vmatpush2.msra.mxu0 0.0
    %2320 = vmatprep.subr.mxu0 0.0
    %2321 = vmatpush2.msra.mxu0 0.0
    %2322 = vmatprep.subr.mxu0 0.0
    %2323 = vmatpush2.msra.mxu0 0.0
    %2324 = vmatprep.subr.mxu0 0.0
    %2325 = vmatpush2.msra.mxu0 0.0
    %2326 = vmatprep.subr.mxu0 0.0
    %2327 = vmatpush2.msra.mxu0 0.0
    %2328 = vmatprep.subr.mxu0 0.0
    %2329 = vmatpush2.msra.mxu0 0.0
    %2330 = vmatprep.subr.mxu0 0.0
    %2331 = vmatpush2.msra.mxu0 0.0
    %2332 = vmatprep.subr.mxu0 0.0
    %2333 = vmatpush2.msra.mxu0 0.0
    %2334 = vmatprep.subr.mxu0 0.0
    %2335 = vmatpush2.msra.mxu0 0.0
    %2336 = vmatprep.subr.mxu0 0.0
    %2337 = vmatpush2.msra.mxu0 0.0
    %2338 = vmatprep.subr.mxu0 0.0
    %2339 = vmatpush2.msra.mxu0 0.0
    %2340 = vmatprep.subr.mxu0 0.0
    %2341 = vmatpush2.msra.mxu0 0.0
    %2342 = vmatprep.subr.mxu0 0.0
    %2343 = vmatpush2.msra.mxu0 0.0
    %2344 = vmatprep.subr.mxu0 0.0
    %2345 = vmatpush2.msra.mxu0 0.0
    %2346 = vmatprep.subr.mxu0 0.0
    %2347 = vmatpush2.msra.mxu0 0.0
    %2348 = vmatprep.mubr.f32.mxu0 0.0
    %2349 = vmatmul.mubr.f32.gmra.mxu0 %v2282
    %v2350 = vpop.f32.mrf.mxu0
    %v2351 = vadd.f32 0.0, %v2350
    %v2352 = vpop.f32.mrf.mxu0
    %2353 = vdwg.mxu0
    %v2354 = vadd.f32 %v1312, %v2351
    %s2355 = scalar_lea.vmem [#allocation10], 96
    %v2356 = vld [vmem:[%s2355] sm:$0xff]
    %v2357 = vld [vmem:[%s2355 + $0x8] sm:$0xff]
    %v2358 = vld [vmem:[%s2355 + $0x10] sm:$0xff]
    %v2359 = vld [vmem:[%s2355 + $0x18] sm:$0xff]
    %v2362 = vsel %vm1166, %v2273, %v2266
    %v2363 = vsel %vm474, %v2362, 0
    %2365 = vmatprep.subr.mxu0 0.0
    %2366 = vmatpush1.msra.mxu0 0.0
    %2367 = vmatprep.subr.mxu0 0.0
    %2368 = vmatpush1.msra.mxu0 0.0
    %2369 = vmatprep.subr.mxu0 0.0
    %2370 = vmatpush1.msra.mxu0 0.0
    %2371 = vmatprep.subr.mxu0 0.0
    %2372 = vmatpush1.msra.mxu0 0.0
    %2373 = vmatprep.subr.mxu0 0.0
    %2374 = vmatpush1.msra.mxu0 0.0
    %2375 = vmatprep.subr.mxu0 0.0
    %2376 = vmatpush1.msra.mxu0 0.0
    %2377 = vmatprep.subr.mxu0 0.0
    %2378 = vmatpush1.msra.mxu0 0.0
    %2379 = vmatprep.subr.mxu0 0.0
    %2380 = vmatpush1.msra.mxu0 0.0
    %2381 = vmatprep.subr.mxu0 0.0
    %2382 = vmatpush1.msra.mxu0 0.0
    %2383 = vmatprep.subr.mxu0 0.0
    %2384 = vmatpush1.msra.mxu0 0.0
    %2385 = vmatprep.subr.mxu0 0.0
    %2386 = vmatpush1.msra.mxu0 0.0
    %2387 = vmatprep.subr.mxu0 0.0
    %2388 = vmatpush1.msra.mxu0 0.0
    %2389 = vmatprep.subr.mxu0 0.0
    %2390 = vmatpush1.msra.mxu0 %v2359
    %2391 = vmatprep.subr.mxu0 0.0
    %2392 = vmatpush1.msra.mxu0 %v2358
    %2393 = vmatprep.subr.mxu0 0.0
    %2394 = vmatpush1.msra.mxu0 %v2357
    %2395 = vmatprep.subr.mxu0 0.0
    %2396 = vmatpush1.msra.mxu0 %v2356
    %2397 = vmatprep.subr.mxu0 0.0
    %2398 = vmatpush2.msra.mxu0 0.0
    %2399 = vmatprep.subr.mxu0 0.0
    %2400 = vmatpush2.msra.mxu0 0.0
    %2401 = vmatprep.subr.mxu0 0.0
    %2402 = vmatpush2.msra.mxu0 0.0
    %2403 = vmatprep.subr.mxu0 0.0
    %2404 = vmatpush2.msra.mxu0 0.0
    %2405 = vmatprep.subr.mxu0 0.0
    %2406 = vmatpush2.msra.mxu0 0.0
    %2407 = vmatprep.subr.mxu0 0.0
    %2408 = vmatpush2.msra.mxu0 0.0
    %2409 = vmatprep.subr.mxu0 0.0
    %2410 = vmatpush2.msra.mxu0 0.0
    %2411 = vmatprep.subr.mxu0 0.0
    %2412 = vmatpush2.msra.mxu0 0.0
    %2413 = vmatprep.subr.mxu0 0.0
    %2414 = vmatpush2.msra.mxu0 0.0
    %2415 = vmatprep.subr.mxu0 0.0
    %2416 = vmatpush2.msra.mxu0 0.0
    %2417 = vmatprep.subr.mxu0 0.0
    %2418 = vmatpush2.msra.mxu0 0.0
    %2419 = vmatprep.subr.mxu0 0.0
    %2420 = vmatpush2.msra.mxu0 0.0
    %2421 = vmatprep.subr.mxu0 0.0
    %2422 = vmatpush2.msra.mxu0 0.0
    %2423 = vmatprep.subr.mxu0 0.0
    %2424 = vmatpush2.msra.mxu0 0.0
    %2425 = vmatprep.subr.mxu0 0.0
    %2426 = vmatpush2.msra.mxu0 0.0
    %2427 = vmatprep.subr.mxu0 0.0
    %2428 = vmatpush2.msra.mxu0 0.0
    %2429 = vmatprep.mubr.f32.mxu0 0.0
    %2430 = vmatmul.mubr.f32.gmra.mxu0 %v2363
    %v2431 = vpop.f32.mrf.mxu0
    %v2432 = vadd.f32 0.0, %v2431
    %v2433 = vpop.f32.mrf.mxu0
    %2434 = vdwg.mxu0
    %v2435 = vadd.f32 %v2354, %v2432
    %v2436 = vld [vmem:[%s10] sm:$0x1]
    %v2438 = vlaneseq
    %v2439 = vshrl.u32 %v2438, 7
    %v2440 = vsub.s32 0, %v2439
    %v2441 = vrot.slane %v2436, %v2440
    %v2443 = vadd.f32 %v2435, %v2441
    %v2444 = vmax.f32 %v2443, 0.0
    %v2445 = vld [vmem:[%s11] sm:$0xff]
    %v2446 = vld [vmem:[%s11 + $0x8] sm:$0xff]
    %v2447 = vld [vmem:[%s11 + $0x10] sm:$0xff]
    %v2448 = vld [vmem:[%s11 + $0x18] sm:$0xff]
    %v2449 = vld [vmem:[%s12] sm:$0x1]
    %v2451 = vlaneseq
    %v2452 = vshrl.u32 %v2451, 7
    %v2453 = vsub.s32 0, %v2452
    %v2454 = vrot.slane %v2449, %v2453
    %v2457 = vsel %vm474, %v2444, 0
    %2459 = vmatprep.subr.mxu0 0.0
    %2460 = vmatpush1.msra.mxu0 0.0
    %2461 = vmatprep.subr.mxu0 0.0
    %2462 = vmatpush1.msra.mxu0 0.0
    %2463 = vmatprep.subr.mxu0 0.0
    %2464 = vmatpush1.msra.mxu0 0.0
    %2465 = vmatprep.subr.mxu0 0.0
    %2466 = vmatpush1.msra.mxu0 0.0
    %2467 = vmatprep.subr.mxu0 0.0
    %2468 = vmatpush1.msra.mxu0 0.0
    %2469 = vmatprep.subr.mxu0 0.0
    %2470 = vmatpush1.msra.mxu0 0.0
    %2471 = vmatprep.subr.mxu0 0.0
    %2472 = vmatpush1.msra.mxu0 0.0
    %2473 = vmatprep.subr.mxu0 0.0
    %2474 = vmatpush1.msra.mxu0 0.0
    %2475 = vmatprep.subr.mxu0 0.0
    %2476 = vmatpush1.msra.mxu0 0.0
    %2477 = vmatprep.subr.mxu0 0.0
    %2478 = vmatpush1.msra.mxu0 0.0
    %2479 = vmatprep.subr.mxu0 0.0
    %2480 = vmatpush1.msra.mxu0 0.0
    %2481 = vmatprep.subr.mxu0 0.0
    %2482 = vmatpush1.msra.mxu0 0.0
    %2483 = vmatprep.subr.mxu0 0.0
    %2484 = vmatpush1.msra.mxu0 %v2448
    %2485 = vmatprep.subr.mxu0 0.0
    %2486 = vmatpush1.msra.mxu0 %v2447
    %2487 = vmatprep.subr.mxu0 0.0
    %2488 = vmatpush1.msra.mxu0 %v2446
    %2489 = vmatprep.subr.mxu0 0.0
    %2490 = vmatpush1.msra.mxu0 %v2445
    %2491 = vmatprep.subr.mxu0 0.0
    %2492 = vmatpush2.msra.mxu0 0.0
    %2493 = vmatprep.subr.mxu0 0.0
    %2494 = vmatpush2.msra.mxu0 0.0
    %2495 = vmatprep.subr.mxu0 0.0
    %2496 = vmatpush2.msra.mxu0 0.0
    %2497 = vmatprep.subr.mxu0 0.0
    %2498 = vmatpush2.msra.mxu0 0.0
    %2499 = vmatprep.subr.mxu0 0.0
    %2500 = vmatpush2.msra.mxu0 0.0
    %2501 = vmatprep.subr.mxu0 0.0
    %2502 = vmatpush2.msra.mxu0 0.0
    %2503 = vmatprep.subr.mxu0 0.0
    %2504 = vmatpush2.msra.mxu0 0.0
    %2505 = vmatprep.subr.mxu0 0.0
    %2506 = vmatpush2.msra.mxu0 0.0
    %2507 = vmatprep.subr.mxu0 0.0
    %2508 = vmatpush2.msra.mxu0 0.0
    %2509 = vmatprep.subr.mxu0 0.0
    %2510 = vmatpush2.msra.mxu0 0.0
    %2511 = vmatprep.subr.mxu0 0.0
    %2512 = vmatpush2.msra.mxu0 0.0
    %2513 = vmatprep.subr.mxu0 0.0
    %2514 = vmatpush2.msra.mxu0 0.0
    %2515 = vmatprep.subr.mxu0 0.0
    %2516 = vmatpush2.msra.mxu0 0.0
    %2517 = vmatprep.subr.mxu0 0.0
    %2518 = vmatpush2.msra.mxu0 0.0
    %2519 = vmatprep.subr.mxu0 0.0
    %2520 = vmatpush2.msra.mxu0 0.0
    %2521 = vmatprep.subr.mxu0 0.0
    %2522 = vmatpush2.msra.mxu0 0.0
    %2523 = vmatprep.mubr.f32.mxu0 0.0
    %2524 = vmatmul.mubr.f32.gmra.mxu0 %v2457
    %v2525 = vpop.f32.mrf.mxu0
    %v2526 = vadd.f32 %v2454, %v2525
    %v2527 = vpop.f32.mrf.mxu0
    %2528 = vdwg.mxu0
    %v2529 = vmax.f32 %v2526, 0.0
    %v2530 = vld [vmem:[%s13] sm:$0xff]
    %v2531 = vld [vmem:[%s13 + $0x8] sm:$0xff]
    %v2532 = vld [vmem:[%s13 + $0x10] sm:$0xff]
    %v2533 = vld [vmem:[%s13 + $0x18] sm:$0xff]
    %v2534 = vld [vmem:[%s14] sm:$0x1]
    %v2536 = vlaneseq
    %v2537 = vshrl.u32 %v2536, 7
    %v2538 = vsub.s32 0, %v2537
    %v2539 = vrot.slane %v2534, %v2538
    %v2542 = vsel %vm474, %v2529, 0
    %2544 = vmatprep.subr.mxu0 0.0
    %2545 = vmatpush1.msra.mxu0 0.0
    %2546 = vmatprep.subr.mxu0 0.0
    %2547 = vmatpush1.msra.mxu0 0.0
    %2548 = vmatprep.subr.mxu0 0.0
    %2549 = vmatpush1.msra.mxu0 0.0
    %2550 = vmatprep.subr.mxu0 0.0
    %2551 = vmatpush1.msra.mxu0 0.0
    %2552 = vmatprep.subr.mxu0 0.0
    %2553 = vmatpush1.msra.mxu0 0.0
    %2554 = vmatprep.subr.mxu0 0.0
    %2555 = vmatpush1.msra.mxu0 0.0
    %2556 = vmatprep.subr.mxu0 0.0
    %2557 = vmatpush1.msra.mxu0 0.0
    %2558 = vmatprep.subr.mxu0 0.0
    %2559 = vmatpush1.msra.mxu0 0.0
    %2560 = vmatprep.subr.mxu0 0.0
    %2561 = vmatpush1.msra.mxu0 0.0
    %2562 = vmatprep.subr.mxu0 0.0
    %2563 = vmatpush1.msra.mxu0 0.0
    %2564 = vmatprep.subr.mxu0 0.0
    %2565 = vmatpush1.msra.mxu0 0.0
    %2566 = vmatprep.subr.mxu0 0.0
    %2567 = vmatpush1.msra.mxu0 0.0
    %2568 = vmatprep.subr.mxu0 0.0
    %2569 = vmatpush1.msra.mxu0 %v2533
    %2570 = vmatprep.subr.mxu0 0.0
    %2571 = vmatpush1.msra.mxu0 %v2532
    %2572 = vmatprep.subr.mxu0 0.0
    %2573 = vmatpush1.msra.mxu0 %v2531
    %2574 = vmatprep.subr.mxu0 0.0
    %2575 = vmatpush1.msra.mxu0 %v2530
    %2576 = vmatprep.subr.mxu0 0.0
    %2577 = vmatpush2.msra.mxu0 0.0
    %2578 = vmatprep.subr.mxu0 0.0
    %2579 = vmatpush2.msra.mxu0 0.0
    %2580 = vmatprep.subr.mxu0 0.0
    %2581 = vmatpush2.msra.mxu0 0.0
    %2582 = vmatprep.subr.mxu0 0.0
    %2583 = vmatpush2.msra.mxu0 0.0
    %2584 = vmatprep.subr.mxu0 0.0
    %2585 = vmatpush2.msra.mxu0 0.0
    %2586 = vmatprep.subr.mxu0 0.0
    %2587 = vmatpush2.msra.mxu0 0.0
    %2588 = vmatprep.subr.mxu0 0.0
    %2589 = vmatpush2.msra.mxu0 0.0
    %2590 = vmatprep.subr.mxu0 0.0
    %2591 = vmatpush2.msra.mxu0 0.0
    %2592 = vmatprep.subr.mxu0 0.0
    %2593 = vmatpush2.msra.mxu0 0.0
    %2594 = vmatprep.subr.mxu0 0.0
    %2595 = vmatpush2.msra.mxu0 0.0
    %2596 = vmatprep.subr.mxu0 0.0
    %2597 = vmatpush2.msra.mxu0 0.0
    %2598 = vmatprep.subr.mxu0 0.0
    %2599 = vmatpush2.msra.mxu0 0.0
    %2600 = vmatprep.subr.mxu0 0.0
    %2601 = vmatpush2.msra.mxu0 0.0
    %2602 = vmatprep.subr.mxu0 0.0
    %2603 = vmatpush2.msra.mxu0 0.0
    %2604 = vmatprep.subr.mxu0 0.0
    %2605 = vmatpush2.msra.mxu0 0.0
    %2606 = vmatprep.subr.mxu0 0.0
    %2607 = vmatpush2.msra.mxu0 0.0
    %2608 = vmatprep.mubr.f32.mxu0 0.0
    %2609 = vmatmul.mubr.f32.gmra.mxu0 %v2542
    %v2610 = vpop.f32.mrf.mxu0
    %v2611 = vadd.f32 %v2539, %v2610
    %v2612 = vpop.f32.mrf.mxu0
    %2613 = vdwg.mxu0
    %vm2614 = vcmask 25600
    %v2615 = vsel %vm2614, %v2611, -inf
    %2616 = vmax.xlane.f32.xlu0 %v2615
    %v2617 = vpop.xlane.xlu0 %2616
    %v2618 = vsub.f32 %v2611, %v2617
    %v2619 = vmul.f32 %v2618, 1.442695
    %v2620 = vpow.pop %v2619
    %v2621 = vsel %vm2614, %v2620, 0.0
    %2622 = vadd.xlane.f32.xlu0 %v2621
    %v2623 = vpop.xlane.xlu0 %2622
    %v2624 = vlog2.pop %v2623
    %v2625 = vmul.f32 %v2624, 0.6931472
    %v2626 = vadd.f32 %v2617, %v2625
    %v2627 = vsub.f32 %v2611, %v2626
    %2628 = vst.msk [vmem:[#allocation11] sm:$0x3] %vm2614, %v2627
    // Predicated region
    $region82: #{tpu_custom_call.1} parent=1 // pred_check
      _
    $region83: #{tpu_custom_call.1} parent=1 // pred_check_branch
      %2630 = sbr.rel (0) target = $region85
    $region84: #{tpu_custom_call.1} parent=1 // pred_region
      %s2632 = ssub.s32 32, 32
      %2633 = vsyncadd [#allocation4], %s2632
      %s2635 = sshll.u32 [#allocation11], 4
      %s2636 = int_to_ptr.vmem [resolvable:$true] %s2635
      %2638 = dma.vmem_to_hbm [thread:$0]  %s2636, 32, %s15, [#allocation4]
    $region85: #{tpu_custom_call.1} parent=1 // pred_fallthru
      _
    // Predicated region
    $region86: #{tpu_custom_call.1} parent=1 // pred_check
      _
    $region87: #{tpu_custom_call.1} parent=1 // pred_check_branch
      %2640 = sbr.rel (0) target = $region89
    $region88: #{tpu_custom_call.1} parent=1 // pred_region
      %2641 = dma.done [#allocation4], 32
    $region89: #{tpu_custom_call.1} parent=1 // pred_fallthru
      _
    %2642 = vsyncpa [#allocation3], 1
    %2643 = vsyncpa [#allocation6], 1
    %2644 = vsyncpa [#allocation9], 1
    %2645 = vsyncpa [#allocation4], 1

</llo_original>
